<compile_context>
chip_gen: v7x
topology: tpu7x:2x2x1
jax: 0.10.0
libtpu: 0.0.40
codegen_flags: <defaults>
</compile_context>

<pallas_src>
import functools

import jax
import jax.numpy as jnp
from jax.experimental import pallas as pl
from jax.experimental.pallas import tpu as pltpu

HIDDEN = 256
LANE = 128
MAX_BATCH_TILE = 256


def _round_up(v, m):
    return ((v + m - 1) // m) * m


def _qnetwork_kernel(x_ref, w1_ref, w2_ref, wh1_ref, wh2_ref, bias_ref, out_ref,
                     *, num_actions, action_scale, n_pad):
    H = HIDDEN
    h1_width = (num_actions + 1) * H

    # Packed bias row: [b1 | b2 | bh1 | bh2] (all 128-aligned static lane slices).
    b1 = bias_ref[:, 0:H]
    b2 = bias_ref[:, H:2 * H]
    bh1 = bias_ref[:, 2 * H:2 * H + h1_width]
    bh2 = bias_ref[:, 2 * H + h1_width:2 * H + h1_width + n_pad]

    x = x_ref[...]

    # Trunk: two Linear+ReLU layers (MXU matmuls, f32 accumulate).
    h = jnp.maximum(
        jnp.dot(x, w1_ref[...], preferred_element_type=jnp.float32) + b1, 0.0)
    h = jnp.maximum(
        jnp.dot(h, w2_ref[...], preferred_element_type=jnp.float32) + b2, 0.0)

    # Fused first layer of all A action heads + value head: one (B,256)x(256,(A+1)*256).
    hcat = jnp.maximum(
        jnp.dot(h, wh1_ref[...], preferred_element_type=jnp.float32) + bh1, 0.0)

    # Fused block-diagonal second layer (+ value column folded in at lane A*scale).
    a_all = jnp.dot(hcat, wh2_ref[...], preferred_element_type=jnp.float32) + bh2

    # Lane-index bookkeeping done with full-width VPU/XLU ops (no narrow slices,
    # no masked partial stores).
    lane = jax.lax.broadcasted_iota(jnp.int32, a_all.shape, 1)

    # State value lives in column num_actions*action_scale.
    value_lane = num_actions * action_scale
    value = jnp.max(jnp.where(lane == value_lane, a_all, -jnp.inf),
                    axis=-1, keepdims=True)                       # (tb, 1)

    # Per-head max, broadcast back onto that head's lanes.
    head_max = jnp.zeros_like(a_all)
    for i in range(num_actions):
        in_head = (lane >= i * action_scale) & (lane < (i + 1) * action_scale)
        m_i = jnp.max(jnp.where(in_head, a_all, -jnp.inf), axis=-1, keepdims=True)
        head_max = jnp.where(in_head, m_i, head_max)

    # advantage normalization: a - max(a) + value   (pad / value lanes are garbage,
    # sliced off in the wrapper).  Single lane-dense store.
    out_ref[...] = a_all - head_max + value


def pack_params(params, action_scale):
    """Fold the 12 PyTorch-style parameter tensors into 5 kernel inputs."""
    (w1, b1, w2, b2, wa1, ba1, wa2, ba2, wv1, bv1, wv2, bv2) = params
    num_actions = wa1.shape[0]
    n_real = num_actions * action_scale + 1          # A heads + 1 value column
    n_pad = _round_up(n_real, LANE)

    # Fused first layer: [wa1_0 | ... | wa1_{A-1} | wv1]  -> (256, (A+1)*256)
    wh1 = jnp.concatenate([wa1[i] for i in range(num_actions)] + [wv1], axis=1)
    bh1 = jnp.concatenate([ba1[i] for i in range(num_actions)] + [bv1], axis=1)

    # Fused block-diagonal second layer (value column folded in), lane-padded to n_pad.
    wh2 = jnp.zeros(((num_actions + 1) * HIDDEN, n_pad), jnp.float32)
    bh2 = jnp.zeros((1, n_pad), jnp.float32)
    for i in range(num_actions):
        wh2 = wh2.at[i * HIDDEN:(i + 1) * HIDDEN,
                     i * action_scale:(i + 1) * action_scale].set(wa2[i])
        bh2 = bh2.at[:, i * action_scale:(i + 1) * action_scale].set(ba2[i])
    v_col = num_actions * action_scale
    wh2 = wh2.at[num_actions * HIDDEN:(num_actions + 1) * HIDDEN,
                 v_col:v_col + 1].set(wv2)
    bh2 = bh2.at[:, v_col:v_col + 1].set(bv2)

    biases = jnp.concatenate([b1, b2, bh1, bh2], axis=1)   # (1, 512+(A+1)*256+n_pad)
    return (w1, w2, wh1, wh2, biases), num_actions, n_pad


def qnetwork_forward(x, packed, num_actions, action_scale, n_pad):
    w1, w2, wh1, wh2, biases = packed
    batch, state_space = x.shape

    # Batch grid: weights stay VMEM-resident, activation tiles are pipelined.
    tb = batch if batch <= MAX_BATCH_TILE else MAX_BATCH_TILE
    padded_batch = _round_up(batch, tb)
    if padded_batch != batch:
        x = jnp.pad(x, ((0, padded_batch - batch), (0, 0)))
    nb = padded_batch // tb

    kernel = functools.partial(_qnetwork_kernel, num_actions=num_actions,
                               action_scale=action_scale, n_pad=n_pad)

    h1_width = (num_actions + 1) * HIDDEN
    flops = 2 * padded_batch * (state_space * HIDDEN + HIDDEN * HIDDEN
                                + HIDDEN * h1_width + h1_width * n_pad)
    bytes_accessed = 4 * (x.size + w1.size + w2.size + wh1.size + wh2.size
                          + biases.size + padded_batch * n_pad)

    resident = lambda i: (0, 0)
    out = pl.pallas_call(
        kernel,
        out_shape=jax.ShapeDtypeStruct((padded_batch, n_pad), jnp.float32),
        grid=(nb,),
        in_specs=[
            pl.BlockSpec((tb, state_space), lambda i: (i, 0)),
            pl.BlockSpec(w1.shape, resident),
            pl.BlockSpec(w2.shape, resident),
            pl.BlockSpec(wh1.shape, resident),
            pl.BlockSpec(wh2.shape, resident),
            pl.BlockSpec(biases.shape, resident),
        ],
        out_specs=pl.BlockSpec((tb, n_pad), lambda i: (i, 0)),
        compiler_params=pltpu.CompilerParams(
            dimension_semantics=("parallel",)),
        cost_estimate=pl.CostEstimate(flops=flops, transcendentals=0,
                                      bytes_accessed=bytes_accessed),
    )(x, w1, w2, wh1, wh2, biases)

    # Lane-dense slab -> (A, batch, action_scale): layout plumbing outside the kernel.
    out = out[:batch, :num_actions * action_scale]
    return out.reshape(batch, num_actions, action_scale).transpose(1, 0, 2)


def init_params(key, state_space, action_space, action_scale):
    """Deterministic synthetic parameters (PyTorch-Linear-like uniform init)."""
    ks = jax.random.split(key, 12)

    def lin(kw, kb, fan_in, fan_out):
        bound = 1.0 / jnp.sqrt(jnp.float32(fan_in))
        w = jax.random.uniform(kw, (fan_in, fan_out), jnp.float32, -bound, bound)
        b = jax.random.uniform(kb, (1, fan_out), jnp.float32, -bound, bound)
        return w, b

    w1, b1 = lin(ks[0], ks[1], state_space, HIDDEN)
    w2, b2 = lin(ks[2], ks[3], HIDDEN, HIDDEN)

    a_keys = jax.random.split(ks[4], 4 * action_space)
    wa1 = jnp.stack([
        lin(a_keys[4 * i + 0], a_keys[4 * i + 1], HIDDEN, HIDDEN)[0]
        for i in range(action_space)])
    ba1 = jnp.stack([
        lin(a_keys[4 * i + 0], a_keys[4 * i + 1], HIDDEN, HIDDEN)[1]
        for i in range(action_space)])
    wa2 = jnp.stack([
        lin(a_keys[4 * i + 2], a_keys[4 * i + 3], HIDDEN, action_scale)[0]
        for i in range(action_space)])
    ba2 = jnp.stack([
        lin(a_keys[4 * i + 2], a_keys[4 * i + 3], HIDDEN, action_scale)[1]
        for i in range(action_space)])

    wv1, bv1 = lin(ks[5], ks[6], HIDDEN, HIDDEN)
    wv2, bv2 = lin(ks[7], ks[8], HIDDEN, 1)

    return (w1, b1, w2, b2, wa1, ba1, wa2, ba2, wv1, bv1, wv2, bv2)


def qnetwork_reference(x, params):
    """Pure-JAX reference matching the PyTorch forward semantics."""
    (w1, b1, w2, b2, wa1, ba1, wa2, ba2, wv1, bv1, wv2, bv2) = params
    h = jax.nn.relu(x @ w1 + b1)
    h = jax.nn.relu(h @ w2 + b2)
    v = jax.nn.relu(h @ wv1 + bv1)
    value = v @ wv2 + bv2
    outs = []
    for i in range(wa1.shape[0]):
        a = jax.nn.relu(h @ wa1[i] + ba1[i])
        a = a @ wa2[i] + ba2[i]
        a = a - jnp.max(a, axis=-1, keepdims=True) + value
        outs.append(a)
    return jnp.stack(outs)


if __name__ == "__main__":
    # Small, module-consistent shapes.
    batch = 8
    state_space = 16
    action_space = 3
    action_scale = 8

    key = jax.random.PRNGKey(0)
    k_x, k_p = jax.random.split(key)
    x = jax.random.normal(k_x, (batch, state_space), dtype=jnp.float32)
    params = init_params(k_p, state_space, action_space, action_scale)

    packed, num_actions, n_pad = pack_params(params, action_scale)

    out = qnetwork_forward(x, packed, num_actions, action_scale, n_pad)
    out = jax.block_until_ready(out)

    ref = qnetwork_reference(x, params)
    assert out.shape == (action_space, batch, action_scale)
    assert jnp.allclose(out, ref, atol=1e-4, rtol=1e-4), "mismatch vs JAX reference"

    print("KERNEL_OK")
</pallas_src>

<mosaic_0001>
module attributes {stable_mosaic.version = 11 : i64} {
  func.func @_qnetwork_kernel(%arg0: i32, %arg1: memref<8x16xf32, #tpu.memory_space<vmem>>, %arg2: memref<16x256xf32, #tpu.memory_space<vmem>>, %arg3: memref<256x256xf32, #tpu.memory_space<vmem>>, %arg4: memref<256x1024xf32, #tpu.memory_space<vmem>>, %arg5: memref<1024x128xf32, #tpu.memory_space<vmem>>, %arg6: memref<1x1664xf32, #tpu.memory_space<vmem>>, %arg7: memref<8x128xf32, #tpu.memory_space<vmem>>) attributes {dimension_semantics = [#tpu.dimension_semantics<parallel>], iteration_bounds = array<i64: 1>, scalar_prefetch = 0 : i64, scratch_operands = 0 : i64, tpu.core_type = #tpu.core_type<tc>, window_params = [{transform_indices = @transform_0, window_bounds = array<i64: 8, 16>}, {pipeline_mode = #tpu.pipeline_mode<synchronous>, transform_indices = @transform_1, window_bounds = array<i64: 16, 256>}, {pipeline_mode = #tpu.pipeline_mode<synchronous>, transform_indices = @transform_2, window_bounds = array<i64: 256, 256>}, {pipeline_mode = #tpu.pipeline_mode<synchronous>, transform_indices = @transform_3, window_bounds = array<i64: 256, 1024>}, {pipeline_mode = #tpu.pipeline_mode<synchronous>, transform_indices = @transform_4, window_bounds = array<i64: 1024, 128>}, {pipeline_mode = #tpu.pipeline_mode<synchronous>, transform_indices = @transform_5, window_bounds = array<i64: 1, 1664>}, {transform_indices = @transform_6, window_bounds = array<i64: 8, 128>}]} {
    %c0 = arith.constant 0 : index
    %c0_0 = arith.constant 0 : index
    %0 = vector.load %arg6[%c0, %c0_0] : memref<1x1664xf32, #tpu.memory_space<vmem>>, vector<1x256xf32>
    %c0_1 = arith.constant 0 : index
    %c256 = arith.constant 256 : index
    %1 = vector.load %arg6[%c0_1, %c256] : memref<1x1664xf32, #tpu.memory_space<vmem>>, vector<1x256xf32>
    %c0_2 = arith.constant 0 : index
    %c512 = arith.constant 512 : index
    %2 = vector.load %arg6[%c0_2, %c512] : memref<1x1664xf32, #tpu.memory_space<vmem>>, vector<1x1024xf32>
    %c0_3 = arith.constant 0 : index
    %c1536 = arith.constant 1536 : index
    %3 = vector.load %arg6[%c0_3, %c1536] : memref<1x1664xf32, #tpu.memory_space<vmem>>, vector<1x128xf32>
    %c0_4 = arith.constant 0 : index
    %c0_5 = arith.constant 0 : index
    %4 = vector.load %arg1[%c0_4, %c0_5] : memref<8x16xf32, #tpu.memory_space<vmem>>, vector<8x16xf32>
    %c0_6 = arith.constant 0 : index
    %c0_7 = arith.constant 0 : index
    %5 = vector.load %arg2[%c0_6, %c0_7] : memref<16x256xf32, #tpu.memory_space<vmem>>, vector<16x256xf32>
    %cst = arith.constant dense<0.000000e+00> : vector<8x256xf32>
    %6 = tpu.matmul %4, %5, %cst {dimension_numbers = #tpu.dot_dimension_numbers<[1], [0], [0], [1], [0, 0, 1, 1], [], []>} : vector<8x16xf32>, vector<16x256xf32>, vector<8x256xf32> -> vector<8x256xf32>
    %7 = vector.broadcast %0 : vector<1x256xf32> to vector<8x256xf32>
    %8 = arith.addf %6, %7 : vector<8x256xf32>
    %cst_8 = arith.constant 0.000000e+00 : f32
    %9 = vector.broadcast %cst_8 : f32 to vector<8x256xf32>
    %10 = arith.maximumf %8, %9 : vector<8x256xf32>
    %c0_9 = arith.constant 0 : index
    %c0_10 = arith.constant 0 : index
    %11 = vector.load %arg3[%c0_9, %c0_10] : memref<256x256xf32, #tpu.memory_space<vmem>>, vector<256x256xf32>
    %cst_11 = arith.constant dense<0.000000e+00> : vector<8x256xf32>
    %12 = tpu.matmul %10, %11, %cst_11 {dimension_numbers = #tpu.dot_dimension_numbers<[1], [0], [0], [1], [0, 0, 1, 1], [], []>} : vector<8x256xf32>, vector<256x256xf32>, vector<8x256xf32> -> vector<8x256xf32>
    %13 = vector.broadcast %1 : vector<1x256xf32> to vector<8x256xf32>
    %14 = arith.addf %12, %13 : vector<8x256xf32>
    %cst_12 = arith.constant 0.000000e+00 : f32
    %15 = vector.broadcast %cst_12 : f32 to vector<8x256xf32>
    %16 = arith.maximumf %14, %15 : vector<8x256xf32>
    %c0_13 = arith.constant 0 : index
    %c0_14 = arith.constant 0 : index
    %17 = vector.load %arg4[%c0_13, %c0_14] : memref<256x1024xf32, #tpu.memory_space<vmem>>, vector<256x1024xf32>
    %cst_15 = arith.constant dense<0.000000e+00> : vector<8x1024xf32>
    %18 = tpu.matmul %16, %17, %cst_15 {dimension_numbers = #tpu.dot_dimension_numbers<[1], [0], [0], [1], [0, 0, 1, 1], [], []>} : vector<8x256xf32>, vector<256x1024xf32>, vector<8x1024xf32> -> vector<8x1024xf32>
    %19 = vector.broadcast %2 : vector<1x1024xf32> to vector<8x1024xf32>
    %20 = arith.addf %18, %19 : vector<8x1024xf32>
    %cst_16 = arith.constant 0.000000e+00 : f32
    %21 = vector.broadcast %cst_16 : f32 to vector<8x1024xf32>
    %22 = arith.maximumf %20, %21 : vector<8x1024xf32>
    %c0_17 = arith.constant 0 : index
    %c0_18 = arith.constant 0 : index
    %23 = vector.load %arg5[%c0_17, %c0_18] : memref<1024x128xf32, #tpu.memory_space<vmem>>, vector<1024x128xf32>
    %cst_19 = arith.constant dense<0.000000e+00> : vector<8x128xf32>
    %24 = tpu.matmul %22, %23, %cst_19 {dimension_numbers = #tpu.dot_dimension_numbers<[1], [0], [0], [1], [0, 0, 1, 1], [], []>} : vector<8x1024xf32>, vector<1024x128xf32>, vector<8x128xf32> -> vector<8x128xf32>
    %25 = vector.broadcast %3 : vector<1x128xf32> to vector<8x128xf32>
    %26 = arith.addf %24, %25 : vector<8x128xf32>
    %27 = tpu.iota {dimensions = array<i32: 1>} : vector<8x128xi32>
    %c24_i32 = arith.constant 24 : i32
    %28 = vector.broadcast %c24_i32 : i32 to vector<8x128xi32>
    %29 = arith.cmpi eq, %27, %28 : vector<8x128xi32>
    %cst_20 = arith.constant 0xFF800000 : f32
    %30 = vector.broadcast %cst_20 : f32 to vector<8x128xf32>
    %31 = arith.select %29, %26, %30 : vector<8x128xi1>, vector<8x128xf32>
    %cst_21 = arith.constant dense<0xFF800000> : vector<8xf32>
    %32 = vector.multi_reduction <maximumf>, %31, %cst_21 [1] : vector<8x128xf32> to vector<8xf32>
    %33 = vector.shape_cast %32 : vector<8xf32> to vector<8x1xf32>
    %cst_22 = arith.constant 0.000000e+00 : f32
    %34 = vector.broadcast %cst_22 : f32 to vector<8x128xf32>
    %c0_i32 = arith.constant 0 : i32
    %35 = vector.broadcast %c0_i32 : i32 to vector<8x128xi32>
    %36 = arith.cmpi sge, %27, %35 : vector<8x128xi32>
    %c8_i32 = arith.constant 8 : i32
    %37 = vector.broadcast %c8_i32 : i32 to vector<8x128xi32>
    %38 = arith.cmpi slt, %27, %37 : vector<8x128xi32>
    %39 = arith.andi %36, %38 : vector<8x128xi1>
    %cst_23 = arith.constant 0xFF800000 : f32
    %40 = vector.broadcast %cst_23 : f32 to vector<8x128xf32>
    %41 = arith.select %39, %26, %40 : vector<8x128xi1>, vector<8x128xf32>
    %cst_24 = arith.constant dense<0xFF800000> : vector<8xf32>
    %42 = vector.multi_reduction <maximumf>, %41, %cst_24 [1] : vector<8x128xf32> to vector<8xf32>
    %43 = vector.shape_cast %42 : vector<8xf32> to vector<8x1xf32>
    %44 = vector.shape_cast %43 : vector<8x1xf32> to vector<8x1xf32>
    %45 = vector.broadcast %44 : vector<8x1xf32> to vector<8x128xf32>
    %46 = arith.select %39, %45, %34 : vector<8x128xi1>, vector<8x128xf32>
    %c8_i32_25 = arith.constant 8 : i32
    %47 = vector.broadcast %c8_i32_25 : i32 to vector<8x128xi32>
    %48 = arith.cmpi sge, %27, %47 : vector<8x128xi32>
    %c16_i32 = arith.constant 16 : i32
    %49 = vector.broadcast %c16_i32 : i32 to vector<8x128xi32>
    %50 = arith.cmpi slt, %27, %49 : vector<8x128xi32>
    %51 = arith.andi %48, %50 : vector<8x128xi1>
    %cst_26 = arith.constant 0xFF800000 : f32
    %52 = vector.broadcast %cst_26 : f32 to vector<8x128xf32>
    %53 = arith.select %51, %26, %52 : vector<8x128xi1>, vector<8x128xf32>
    %cst_27 = arith.constant dense<0xFF800000> : vector<8xf32>
    %54 = vector.multi_reduction <maximumf>, %53, %cst_27 [1] : vector<8x128xf32> to vector<8xf32>
    %55 = vector.shape_cast %54 : vector<8xf32> to vector<8x1xf32>
    %56 = vector.shape_cast %55 : vector<8x1xf32> to vector<8x1xf32>
    %57 = vector.broadcast %56 : vector<8x1xf32> to vector<8x128xf32>
    %58 = arith.select %51, %57, %46 : vector<8x128xi1>, vector<8x128xf32>
    %c16_i32_28 = arith.constant 16 : i32
    %59 = vector.broadcast %c16_i32_28 : i32 to vector<8x128xi32>
    %60 = arith.cmpi sge, %27, %59 : vector<8x128xi32>
    %c24_i32_29 = arith.constant 24 : i32
    %61 = vector.broadcast %c24_i32_29 : i32 to vector<8x128xi32>
    %62 = arith.cmpi slt, %27, %61 : vector<8x128xi32>
    %63 = arith.andi %60, %62 : vector<8x128xi1>
    %cst_30 = arith.constant 0xFF800000 : f32
    %64 = vector.broadcast %cst_30 : f32 to vector<8x128xf32>
    %65 = arith.select %63, %26, %64 : vector<8x128xi1>, vector<8x128xf32>
    %cst_31 = arith.constant dense<0xFF800000> : vector<8xf32>
    %66 = vector.multi_reduction <maximumf>, %65, %cst_31 [1] : vector<8x128xf32> to vector<8xf32>
    %67 = vector.shape_cast %66 : vector<8xf32> to vector<8x1xf32>
    %68 = vector.shape_cast %67 : vector<8x1xf32> to vector<8x1xf32>
    %69 = vector.broadcast %68 : vector<8x1xf32> to vector<8x128xf32>
    %70 = arith.select %63, %69, %58 : vector<8x128xi1>, vector<8x128xf32>
    %71 = arith.subf %26, %70 : vector<8x128xf32>
    %72 = vector.broadcast %33 : vector<8x1xf32> to vector<8x128xf32>
    %73 = arith.addf %71, %72 : vector<8x128xf32>
    %c0_32 = arith.constant 0 : index
    %c0_33 = arith.constant 0 : index
    %74 = vector.load %arg7[%c0_32, %c0_33] : memref<8x128xf32, #tpu.memory_space<vmem>>, vector<8x128xf32>
    tpu.vector_store %arg7[%c0_32, %c0_33], %73 {strides = array<i32>} : memref<8x128xf32, #tpu.memory_space<vmem>>, vector<8x128xf32>,
    return
  }
  func.func @transform_0(%arg0: i32) -> (i32, i32) {
    %c0_i32 = arith.constant 0 : i32
    %c0_i32_0 = arith.constant 0 : i32
    return %arg0, %c0_i32 : i32, i32
  }
  func.func @transform_1(%arg0: i32) -> (i32, i32) {
    %c0_i32 = arith.constant 0 : i32
    %c0_i32_0 = arith.constant 0 : i32
    %c0_i32_1 = arith.constant 0 : i32
    return %c0_i32, %c0_i32_0 : i32, i32
  }
  func.func @transform_2(%arg0: i32) -> (i32, i32) {
    %c0_i32 = arith.constant 0 : i32
    %c0_i32_0 = arith.constant 0 : i32
    %c0_i32_1 = arith.constant 0 : i32
    return %c0_i32, %c0_i32_0 : i32, i32
  }
  func.func @transform_3(%arg0: i32) -> (i32, i32) {
    %c0_i32 = arith.constant 0 : i32
    %c0_i32_0 = arith.constant 0 : i32
    %c0_i32_1 = arith.constant 0 : i32
    return %c0_i32, %c0_i32_0 : i32, i32
  }
  func.func @transform_4(%arg0: i32) -> (i32, i32) {
    %c0_i32 = arith.constant 0 : i32
    %c0_i32_0 = arith.constant 0 : i32
    %c0_i32_1 = arith.constant 0 : i32
    return %c0_i32, %c0_i32_0 : i32, i32
  }
  func.func @transform_5(%arg0: i32) -> (i32, i32) {
    %c0_i32 = arith.constant 0 : i32
    %c0_i32_0 = arith.constant 0 : i32
    %c0_i32_1 = arith.constant 0 : i32
    return %c0_i32, %c0_i32_0 : i32, i32
  }
  func.func @transform_6(%arg0: i32) -> (i32, i32) {
    %c0_i32 = arith.constant 0 : i32
    %c0_i32_0 = arith.constant 0 : i32
    return %arg0, %c0_i32 : i32, i32
  }
}

</mosaic_0001>

<llo_original>
// kernel: tpu_custom_call.1
$region0: #{tpu_custom_call.1}
  #allocation0 [shape = 'u32[]', space=smem, size = 0x4, offset = 0x4, fixed_abs, tag = 'smem constant byte address 0x4 - core index']
  #allocation1 [shape = 'u32[144,128]{1,0:T(1,128)}', space=vmem, size = 0x12000, scoped, tag = 'internal scratch']
  %s0 = inlined_call_operand.hbm [shape: f32[8,16], index: 0, kind: input, shape index: {}]
  %s1 = inlined_call_operand.hbm [shape: f32[16,256], index: 1, kind: input, shape index: {}]
  %s2 = inlined_call_operand.hbm [shape: f32[256,256], index: 2, kind: input, shape index: {}]
  %s3 = inlined_call_operand.hbm [shape: f32[256,1024], index: 3, kind: input, shape index: {}]
  %s4 = inlined_call_operand.hbm [shape: f32[1024,128], index: 4, kind: input, shape index: {}]
  %s5 = inlined_call_operand.vmem [shape: f32[1,1664], index: 5, kind: input, shape index: {}]
  %s6 = inlined_call_operand.hbm [shape: f32[8,128], index: 6, kind: output, shape index: {}]
  %s7 = sld [smem:[#allocation0]]
  $region54: #{tpu_custom_call.1} parent=0
    _
  %s9 = ssub.s32 1, %s7
  %s10 = scalar_select 0, %s9, %s7
  $region1: #{tpu_custom_call.1} parent=0
    #allocation2 [shape = 'u8[4096]{0}', space=vmem, size = 0x1000, scoped, tag = 'input window, operand 0, single buffered']
    #allocation3 [shape = 's32[1]{0}', space=sflag, size = 0x4, scoped, tag = 'scoped memory for tpu_custom_call.1']
    #allocation4 [shape = 's32[1]{0}', space=sflag, size = 0x4, scoped, tag = 'scoped memory for tpu_custom_call.1']
    #allocation5 [shape = 'u8[16384]{0}', space=vmem, size = 0x4000, scoped, tag = 'input window, operand 1, single buffered']
    #allocation6 [shape = 's32[1]{0}', space=sflag, size = 0x4, scoped, tag = 'scoped memory for tpu_custom_call.1']
    #allocation7 [shape = 'u8[262144]{0}', space=vmem, size = 0x40000, scoped, tag = 'input window, operand 2, single buffered']
    #allocation8 [shape = 'u8[1048576]{0}', space=vmem, size = 0x100000, scoped, tag = 'input window, operand 3, single buffered']
    #allocation9 [shape = 's32[1]{0}', space=sflag, size = 0x4, scoped, tag = 'scoped memory for tpu_custom_call.1']
    #allocation10 [shape = 'u8[524288]{0}', space=vmem, size = 0x80000, scoped, tag = 'input window, operand 4, single buffered']
    #allocation11 [shape = 'u8[4096]{0}', space=vmem, size = 0x1000, scoped, tag = 'output window, operand 0, single buffered']
    %11 = vsyncpa [#allocation3], 0
    %12 = vsyncpa [#allocation6], 0
    %13 = vsyncpa [#allocation9], 0
    %14 = vsyncpa [#allocation4], 0
    // Predicated region
    $region2: #{tpu_custom_call.1} parent=1 // pred_check
      _
    $region3: #{tpu_custom_call.1} parent=1 // pred_check_branch
      %16 = sbr.rel (0) target = $region5
    $region4: #{tpu_custom_call.1} parent=1 // pred_region
      %s18 = ssub.s32 128, 128
      %19 = vsyncadd [#allocation3], %s18
      %s21 = sshll.u32 [#allocation2], 4
      %s22 = int_to_ptr.vmem [resolvable:$true] %s21
      %24 = dma.hbm_to_vmem [thread:$0]  %s0, 128, %s22, [#allocation3]
    $region5: #{tpu_custom_call.1} parent=1 // pred_fallthru
      _
    // Predicated region
    $region6: #{tpu_custom_call.1} parent=1 // pred_check
      _
    $region7: #{tpu_custom_call.1} parent=1 // pred_check_branch
      %26 = sbr.rel (0) target = $region9
    $region8: #{tpu_custom_call.1} parent=1 // pred_region
      %s28 = ssub.s32 512, 512
      %29 = vsyncadd [#allocation6], %s28
      %s30 = sshll.u32 [#allocation5], 4
      %s31 = int_to_ptr.vmem [resolvable:$true] %s30
      %36 = dma.hbm_to_vmem [thread:$0]  %s1, 512, %s31, [#allocation6], 256, 256, 16
    $region9: #{tpu_custom_call.1} parent=1 // pred_fallthru
      _
    // Predicated region
    $region10: #{tpu_custom_call.1} parent=1 // pred_check
      _
    $region11: #{tpu_custom_call.1} parent=1 // pred_check_branch
      %38 = sbr.rel (0) target = $region13
    $region12: #{tpu_custom_call.1} parent=1 // pred_region
      %s40 = ssub.s32 8192, 8192
      %41 = vsyncadd [#allocation6], %s40
      %s42 = sshll.u32 [#allocation7], 4
      %s43 = int_to_ptr.vmem [resolvable:$true] %s42
      %48 = dma.hbm_to_vmem [thread:$0]  %s2, 8192, %s43, [#allocation6], 256, 256, 16
    $region13: #{tpu_custom_call.1} parent=1 // pred_fallthru
      _
    // Predicated region
    $region14: #{tpu_custom_call.1} parent=1 // pred_check
      _
    $region15: #{tpu_custom_call.1} parent=1 // pred_check_branch
      %50 = sbr.rel (0) target = $region17
    $region16: #{tpu_custom_call.1} parent=1 // pred_region
      %s52 = ssub.s32 32768, 32768
      %53 = vsyncadd [#allocation9], %s52
      %s54 = sshll.u32 [#allocation8], 4
      %s55 = int_to_ptr.vmem [resolvable:$true] %s54
      %60 = dma.hbm_to_vmem [thread:$0]  %s3, 32768, %s55, [#allocation9], 1024, 1024, 64
    $region17: #{tpu_custom_call.1} parent=1 // pred_fallthru
      _
    // Predicated region
    $region18: #{tpu_custom_call.1} parent=1 // pred_check
      _
    $region19: #{tpu_custom_call.1} parent=1 // pred_check_branch
      %62 = sbr.rel (0) target = $region21
    $region20: #{tpu_custom_call.1} parent=1 // pred_region
      %s64 = ssub.s32 16384, 16384
      %65 = vsyncadd [#allocation9], %s64
      %s66 = sshll.u32 [#allocation10], 4
      %s67 = int_to_ptr.vmem [resolvable:$true] %s66
      %72 = dma.hbm_to_vmem [thread:$0]  %s4, 16384, %s67, [#allocation9], 128, 128, 8
    $region21: #{tpu_custom_call.1} parent=1 // pred_fallthru
      _
    // Predicated region
    $region22: #{tpu_custom_call.1} parent=1 // pred_check
      _
    $region23: #{tpu_custom_call.1} parent=1 // pred_check_branch
      %74 = sbr.rel (0) target = $region25
    $region24: #{tpu_custom_call.1} parent=1 // pred_region
      _
    $region25: #{tpu_custom_call.1} parent=1 // pred_fallthru
      _
    // Predicated region
    $region26: #{tpu_custom_call.1} parent=1 // pred_check
      _
    $region27: #{tpu_custom_call.1} parent=1 // pred_check_branch
      %76 = sbr.rel (0) target = $region29
    $region28: #{tpu_custom_call.1} parent=1 // pred_region
      %77 = dma.done [#allocation3], 128
    $region29: #{tpu_custom_call.1} parent=1 // pred_fallthru
      _
    // Predicated region
    $region30: #{tpu_custom_call.1} parent=1 // pred_check
      _
    $region31: #{tpu_custom_call.1} parent=1 // pred_check_branch
      %79 = sbr.rel (0) target = $region33
    $region32: #{tpu_custom_call.1} parent=1 // pred_region
      %80 = dma.done [#allocation6], 512
    $region33: #{tpu_custom_call.1} parent=1 // pred_fallthru
      _
    // Predicated region
    $region34: #{tpu_custom_call.1} parent=1 // pred_check
      _
    $region35: #{tpu_custom_call.1} parent=1 // pred_check_branch
      %82 = sbr.rel (0) target = $region37
    $region36: #{tpu_custom_call.1} parent=1 // pred_region
      %83 = dma.done [#allocation6], 8192
    $region37: #{tpu_custom_call.1} parent=1 // pred_fallthru
      _
    // Predicated region
    $region38: #{tpu_custom_call.1} parent=1 // pred_check
      _
    $region39: #{tpu_custom_call.1} parent=1 // pred_check_branch
      %85 = sbr.rel (0) target = $region41
    $region40: #{tpu_custom_call.1} parent=1 // pred_region
      %86 = dma.done [#allocation9], 32768
    $region41: #{tpu_custom_call.1} parent=1 // pred_fallthru
      _
    // Predicated region
    $region42: #{tpu_custom_call.1} parent=1 // pred_check
      _
    $region43: #{tpu_custom_call.1} parent=1 // pred_check_branch
      %88 = sbr.rel (0) target = $region45
    $region44: #{tpu_custom_call.1} parent=1 // pred_region
      %89 = dma.done [#allocation9], 16384
    $region45: #{tpu_custom_call.1} parent=1 // pred_fallthru
      _
    %v90 = vld [vmem:[%s5] sm:$0x3]
    %v91 = vld [vmem:[%s5 + $0x2] sm:$0x3]
    %v92 = vld [vmem:[%s5 + $0x4] sm:$0xff]
    %v93 = vld [vmem:[%s5 + $0xc] sm:$0x1]
    %v94 = vld [vmem:[#allocation2] sm:$0xff]
    %v95 = vld [vmem:[#allocation5] sm:$0xff]
    %v96 = vld [vmem:[#allocation5 + $0x8] sm:$0xff]
    %v97 = vld [vmem:[#allocation5 + $0x10] sm:$0xff]
    %v98 = vld [vmem:[#allocation5 + $0x18] sm:$0xff]
    %v100 = vlaneseq
    %v101 = vshrl.u32 %v100, 7
    %v102 = vsub.s32 0, %v101
    %v103 = vrot.slane %v90, %v102
    %v104 = vlaneseq
    %v105 = vshrl.u32 %v104, 7
    %v106 = vsub.s32 1, %v105
    %v107 = vrot.slane %v90, %v106
    %vm110 = vcmask 130048
    %v112 = vsel %vm110, %v94, 0
    %114 = vmatprep.subr.mxu0 %v96
    %115 = vmatpush1.msra.mxu0 %v95
    %116 = vmatprep.subr.mxu0 %v98
    %117 = vmatpush1.msra.mxu0 %v97
    %118 = vmatprep.subr.mxu0 0.0
    %119 = vmatpush1.msra.mxu0 0.0
    %120 = vmatprep.subr.mxu0 0.0
    %121 = vmatpush1.msra.mxu0 0.0
    %122 = vmatprep.subr.mxu0 0.0
    %123 = vmatpush1.msra.mxu0 0.0
    %124 = vmatprep.subr.mxu0 0.0
    %125 = vmatpush1.msra.mxu0 0.0
    %126 = vmatprep.subr.mxu0 0.0
    %127 = vmatpush1.msra.mxu0 0.0
    %128 = vmatprep.subr.mxu0 0.0
    %129 = vmatpush1.msra.mxu0 0.0
    %130 = vmatprep.subr.mxu0 0.0
    %131 = vmatpush1.msra.mxu0 0.0
    %132 = vmatprep.subr.mxu0 0.0
    %133 = vmatpush1.msra.mxu0 0.0
    %134 = vmatprep.subr.mxu0 0.0
    %135 = vmatpush1.msra.mxu0 0.0
    %136 = vmatprep.subr.mxu0 0.0
    %137 = vmatpush1.msra.mxu0 0.0
    %138 = vmatprep.subr.mxu0 0.0
    %139 = vmatpush1.msra.mxu0 0.0
    %140 = vmatprep.subr.mxu0 0.0
    %141 = vmatpush1.msra.mxu0 0.0
    %142 = vmatprep.subr.mxu0 0.0
    %143 = vmatpush1.msra.mxu0 0.0
    %144 = vmatprep.subr.mxu0 0.0
    %145 = vmatpush1.msra.mxu0 0.0
    %146 = vmatprep.subr.mxu0 0.0
    %147 = vmatpush1.msra.mxu0 0.0
    %148 = vmatprep.subr.mxu0 0.0
    %149 = vmatpush1.msra.mxu0 0.0
    %150 = vmatprep.subr.mxu0 0.0
    %151 = vmatpush1.msra.mxu0 0.0
    %152 = vmatprep.subr.mxu0 0.0
    %153 = vmatpush1.msra.mxu0 0.0
    %154 = vmatprep.subr.mxu0 0.0
    %155 = vmatpush1.msra.mxu0 0.0
    %156 = vmatprep.subr.mxu0 0.0
    %157 = vmatpush1.msra.mxu0 0.0
    %158 = vmatprep.subr.mxu0 0.0
    %159 = vmatpush1.msra.mxu0 0.0
    %160 = vmatprep.subr.mxu0 0.0
    %161 = vmatpush1.msra.mxu0 0.0
    %162 = vmatprep.subr.mxu0 0.0
    %163 = vmatpush1.msra.mxu0 0.0
    %164 = vmatprep.subr.mxu0 0.0
    %165 = vmatpush1.msra.mxu0 0.0
    %166 = vmatprep.subr.mxu0 0.0
    %167 = vmatpush1.msra.mxu0 0.0
    %168 = vmatprep.subr.mxu0 0.0
    %169 = vmatpush1.msra.mxu0 0.0
    %170 = vmatprep.subr.mxu0 0.0
    %171 = vmatpush1.msra.mxu0 0.0
    %172 = vmatprep.subr.mxu0 0.0
    %173 = vmatpush1.msra.mxu0 0.0
    %174 = vmatprep.subr.mxu0 0.0
    %175 = vmatpush1.msra.mxu0 0.0
    %176 = vmatprep.subr.mxu0 0.0
    %177 = vmatpush1.msra.mxu0 0.0
    %178 = vmatprep.mubr.f32.mxu0 0.0
    %179 = vmatmul.mubr.f32.gmra.mrb[0].mxu0 %v112
    %v180 = vpop.f32.mrb[0].mxu0
    %v181 = vadd.f32 %v103, %v180
    %v182 = vpop.f32.mrb[0].mxu0
    %v183 = vadd.f32 %v107, %v182
    %184 = vdwg.mxu0
    %v185 = vmax.f32 %v181, 0.0
    %v186 = vmax.f32 %v183, 0.0
    %v187 = vld [vmem:[#allocation7] sm:$0xff]
    %v188 = vld [vmem:[#allocation7 + $0x8] sm:$0xff]
    %v189 = vld [vmem:[#allocation7 + $0x10] sm:$0xff]
    %v190 = vld [vmem:[#allocation7 + $0x18] sm:$0xff]
    %v191 = vld [vmem:[#allocation7 + $0x20] sm:$0xff]
    %v192 = vld [vmem:[#allocation7 + $0x28] sm:$0xff]
    %v193 = vld [vmem:[#allocation7 + $0x30] sm:$0xff]
    %v194 = vld [vmem:[#allocation7 + $0x38] sm:$0xff]
    %v195 = vld [vmem:[#allocation7 + $0x40] sm:$0xff]
    %v196 = vld [vmem:[#allocation7 + $0x48] sm:$0xff]
    %v197 = vld [vmem:[#allocation7 + $0x50] sm:$0xff]
    %v198 = vld [vmem:[#allocation7 + $0x58] sm:$0xff]
    %v199 = vld [vmem:[#allocation7 + $0x60] sm:$0xff]
    %v200 = vld [vmem:[#allocation7 + $0x68] sm:$0xff]
    %v201 = vld [vmem:[#allocation7 + $0x70] sm:$0xff]
    %v202 = vld [vmem:[#allocation7 + $0x78] sm:$0xff]
    %v203 = vld [vmem:[#allocation7 + $0x80] sm:$0xff]
    %v204 = vld [vmem:[#allocation7 + $0x88] sm:$0xff]
    %v205 = vld [vmem:[#allocation7 + $0x90] sm:$0xff]
    %v206 = vld [vmem:[#allocation7 + $0x98] sm:$0xff]
    %v207 = vld [vmem:[#allocation7 + $0xa0] sm:$0xff]
    %v208 = vld [vmem:[#allocation7 + $0xa8] sm:$0xff]
    %v209 = vld [vmem:[#allocation7 + $0xb0] sm:$0xff]
    %v210 = vld [vmem:[#allocation7 + $0xb8] sm:$0xff]
    %v211 = vld [vmem:[#allocation7 + $0xc0] sm:$0xff]
    %v212 = vld [vmem:[#allocation7 + $0xc8] sm:$0xff]
    %v213 = vld [vmem:[#allocation7 + $0xd0] sm:$0xff]
    %v214 = vld [vmem:[#allocation7 + $0xd8] sm:$0xff]
    %v215 = vld [vmem:[#allocation7 + $0xe0] sm:$0xff]
    %v216 = vld [vmem:[#allocation7 + $0xe8] sm:$0xff]
    %v217 = vld [vmem:[#allocation7 + $0xf0] sm:$0xff]
    %v218 = vld [vmem:[#allocation7 + $0xf8] sm:$0xff]
    %v219 = vld [vmem:[#allocation7 + $0x100] sm:$0xff]
    %v220 = vld [vmem:[#allocation7 + $0x108] sm:$0xff]
    %v221 = vld [vmem:[#allocation7 + $0x110] sm:$0xff]
    %v222 = vld [vmem:[#allocation7 + $0x118] sm:$0xff]
    %v223 = vld [vmem:[#allocation7 + $0x120] sm:$0xff]
    %v224 = vld [vmem:[#allocation7 + $0x128] sm:$0xff]
    %v225 = vld [vmem:[#allocation7 + $0x130] sm:$0xff]
    %v226 = vld [vmem:[#allocation7 + $0x138] sm:$0xff]
    %v227 = vld [vmem:[#allocation7 + $0x140] sm:$0xff]
    %v228 = vld [vmem:[#allocation7 + $0x148] sm:$0xff]
    %v229 = vld [vmem:[#allocation7 + $0x150] sm:$0xff]
    %v230 = vld [vmem:[#allocation7 + $0x158] sm:$0xff]
    %v231 = vld [vmem:[#allocation7 + $0x160] sm:$0xff]
    %v232 = vld [vmem:[#allocation7 + $0x168] sm:$0xff]
    %v233 = vld [vmem:[#allocation7 + $0x170] sm:$0xff]
    %v234 = vld [vmem:[#allocation7 + $0x178] sm:$0xff]
    %v235 = vld [vmem:[#allocation7 + $0x180] sm:$0xff]
    %v236 = vld [vmem:[#allocation7 + $0x188] sm:$0xff]
    %v237 = vld [vmem:[#allocation7 + $0x190] sm:$0xff]
    %v238 = vld [vmem:[#allocation7 + $0x198] sm:$0xff]
    %v239 = vld [vmem:[#allocation7 + $0x1a0] sm:$0xff]
    %v240 = vld [vmem:[#allocation7 + $0x1a8] sm:$0xff]
    %v241 = vld [vmem:[#allocation7 + $0x1b0] sm:$0xff]
    %v242 = vld [vmem:[#allocation7 + $0x1b8] sm:$0xff]
    %v243 = vld [vmem:[#allocation7 + $0x1c0] sm:$0xff]
    %v244 = vld [vmem:[#allocation7 + $0x1c8] sm:$0xff]
    %v245 = vld [vmem:[#allocation7 + $0x1d0] sm:$0xff]
    %v246 = vld [vmem:[#allocation7 + $0x1d8] sm:$0xff]
    %v247 = vld [vmem:[#allocation7 + $0x1e0] sm:$0xff]
    %v248 = vld [vmem:[#allocation7 + $0x1e8] sm:$0xff]
    %v249 = vld [vmem:[#allocation7 + $0x1f0] sm:$0xff]
    %v250 = vld [vmem:[#allocation7 + $0x1f8] sm:$0xff]
    %v252 = vlaneseq
    %v253 = vshrl.u32 %v252, 7
    %v254 = vsub.s32 0, %v253
    %v255 = vrot.slane %v91, %v254
    %v256 = vlaneseq
    %v257 = vshrl.u32 %v256, 7
    %v258 = vsub.s32 1, %v257
    %v259 = vrot.slane %v91, %v258
    %262 = vmatprep.subr.mxu0 %v188
    %263 = vmatpush1.msra.mxu0 %v187
    %264 = vmatprep.subr.mxu0 %v190
    %265 = vmatpush1.msra.mxu0 %v189
    %266 = vmatprep.subr.mxu0 %v192
    %267 = vmatpush1.msra.mxu0 %v191
    %268 = vmatprep.subr.mxu0 %v194
    %269 = vmatpush1.msra.mxu0 %v193
    %270 = vmatprep.subr.mxu0 %v196
    %271 = vmatpush1.msra.mxu0 %v195
    %272 = vmatprep.subr.mxu0 %v198
    %273 = vmatpush1.msra.mxu0 %v197
    %274 = vmatprep.subr.mxu0 %v200
    %275 = vmatpush1.msra.mxu0 %v199
    %276 = vmatprep.subr.mxu0 %v202
    %277 = vmatpush1.msra.mxu0 %v201
    %278 = vmatprep.subr.mxu0 %v204
    %279 = vmatpush1.msra.mxu0 %v203
    %280 = vmatprep.subr.mxu0 %v206
    %281 = vmatpush1.msra.mxu0 %v205
    %282 = vmatprep.subr.mxu0 %v208
    %283 = vmatpush1.msra.mxu0 %v207
    %284 = vmatprep.subr.mxu0 %v210
    %285 = vmatpush1.msra.mxu0 %v209
    %286 = vmatprep.subr.mxu0 %v212
    %287 = vmatpush1.msra.mxu0 %v211
    %288 = vmatprep.subr.mxu0 %v214
    %289 = vmatpush1.msra.mxu0 %v213
    %290 = vmatprep.subr.mxu0 %v216
    %291 = vmatpush1.msra.mxu0 %v215
    %292 = vmatprep.subr.mxu0 %v218
    %293 = vmatpush1.msra.mxu0 %v217
    %294 = vmatprep.subr.mxu0 %v220
    %295 = vmatpush1.msra.mxu0 %v219
    %296 = vmatprep.subr.mxu0 %v222
    %297 = vmatpush1.msra.mxu0 %v221
    %298 = vmatprep.subr.mxu0 %v224
    %299 = vmatpush1.msra.mxu0 %v223
    %300 = vmatprep.subr.mxu0 %v226
    %301 = vmatpush1.msra.mxu0 %v225
    %302 = vmatprep.subr.mxu0 %v228
    %303 = vmatpush1.msra.mxu0 %v227
    %304 = vmatprep.subr.mxu0 %v230
    %305 = vmatpush1.msra.mxu0 %v229
    %306 = vmatprep.subr.mxu0 %v232
    %307 = vmatpush1.msra.mxu0 %v231
    %308 = vmatprep.subr.mxu0 %v234
    %309 = vmatpush1.msra.mxu0 %v233
    %310 = vmatprep.subr.mxu0 %v236
    %311 = vmatpush1.msra.mxu0 %v235
    %312 = vmatprep.subr.mxu0 %v238
    %313 = vmatpush1.msra.mxu0 %v237
    %314 = vmatprep.subr.mxu0 %v240
    %315 = vmatpush1.msra.mxu0 %v239
    %316 = vmatprep.subr.mxu0 %v242
    %317 = vmatpush1.msra.mxu0 %v241
    %318 = vmatprep.subr.mxu0 %v244
    %319 = vmatpush1.msra.mxu0 %v243
    %320 = vmatprep.subr.mxu0 %v246
    %321 = vmatpush1.msra.mxu0 %v245
    %322 = vmatprep.subr.mxu0 %v248
    %323 = vmatpush1.msra.mxu0 %v247
    %324 = vmatprep.subr.mxu0 %v250
    %325 = vmatpush1.msra.mxu0 %v249
    %326 = vmatprep.mubr.f32.mxu0 %v186
    %327 = vmatmul.mubr.f32.gmra.mrb[0].mxu0 %v185
    %v328 = vpop.f32.mrb[0].mxu0
    %v329 = vadd.f32 %v255, %v328
    %v330 = vpop.f32.mrb[0].mxu0
    %v331 = vadd.f32 %v259, %v330
    %332 = vdwg.mxu0
    %v333 = vmax.f32 %v329, 0.0
    %v334 = vmax.f32 %v331, 0.0
    %v335 = vld [vmem:[#allocation8] sm:$0xff]
    %v336 = vld [vmem:[#allocation8 + $0x8] sm:$0xff]
    %v337 = vld [vmem:[#allocation8 + $0x10] sm:$0xff]
    %v338 = vld [vmem:[#allocation8 + $0x18] sm:$0xff]
    %v339 = vld [vmem:[#allocation8 + $0x20] sm:$0xff]
    %v340 = vld [vmem:[#allocation8 + $0x28] sm:$0xff]
    %v341 = vld [vmem:[#allocation8 + $0x30] sm:$0xff]
    %v342 = vld [vmem:[#allocation8 + $0x38] sm:$0xff]
    %v343 = vld [vmem:[#allocation8 + $0x40] sm:$0xff]
    %v344 = vld [vmem:[#allocation8 + $0x48] sm:$0xff]
    %v345 = vld [vmem:[#allocation8 + $0x50] sm:$0xff]
    %v346 = vld [vmem:[#allocation8 + $0x58] sm:$0xff]
    %v347 = vld [vmem:[#allocation8 + $0x60] sm:$0xff]
    %v348 = vld [vmem:[#allocation8 + $0x68] sm:$0xff]
    %v349 = vld [vmem:[#allocation8 + $0x70] sm:$0xff]
    %v350 = vld [vmem:[#allocation8 + $0x78] sm:$0xff]
    %v351 = vld [vmem:[#allocation8 + $0x80] sm:$0xff]
    %v352 = vld [vmem:[#allocation8 + $0x88] sm:$0xff]
    %v353 = vld [vmem:[#allocation8 + $0x90] sm:$0xff]
    %v354 = vld [vmem:[#allocation8 + $0x98] sm:$0xff]
    %v355 = vld [vmem:[#allocation8 + $0xa0] sm:$0xff]
    %v356 = vld [vmem:[#allocation8 + $0xa8] sm:$0xff]
    %v357 = vld [vmem:[#allocation8 + $0xb0] sm:$0xff]
    %v358 = vld [vmem:[#allocation8 + $0xb8] sm:$0xff]
    %v359 = vld [vmem:[#allocation8 + $0xc0] sm:$0xff]
    %v360 = vld [vmem:[#allocation8 + $0xc8] sm:$0xff]
    %v361 = vld [vmem:[#allocation8 + $0xd0] sm:$0xff]
    %v362 = vld [vmem:[#allocation8 + $0xd8] sm:$0xff]
    %v363 = vld [vmem:[#allocation8 + $0xe0] sm:$0xff]
    %v364 = vld [vmem:[#allocation8 + $0xe8] sm:$0xff]
    %v365 = vld [vmem:[#allocation8 + $0xf0] sm:$0xff]
    %v366 = vld [vmem:[#allocation8 + $0xf8] sm:$0xff]
    %v367 = vld [vmem:[#allocation8 + $0x100] sm:$0xff]
    %v368 = vld [vmem:[#allocation8 + $0x108] sm:$0xff]
    %v369 = vld [vmem:[#allocation8 + $0x110] sm:$0xff]
    %v370 = vld [vmem:[#allocation8 + $0x118] sm:$0xff]
    %v371 = vld [vmem:[#allocation8 + $0x120] sm:$0xff]
    %v372 = vld [vmem:[#allocation8 + $0x128] sm:$0xff]
    %v373 = vld [vmem:[#allocation8 + $0x130] sm:$0xff]
    %v374 = vld [vmem:[#allocation8 + $0x138] sm:$0xff]
    %v375 = vld [vmem:[#allocation8 + $0x140] sm:$0xff]
    %v376 = vld [vmem:[#allocation8 + $0x148] sm:$0xff]
    %v377 = vld [vmem:[#allocation8 + $0x150] sm:$0xff]
    %v378 = vld [vmem:[#allocation8 + $0x158] sm:$0xff]
    %v379 = vld [vmem:[#allocation8 + $0x160] sm:$0xff]
    %v380 = vld [vmem:[#allocation8 + $0x168] sm:$0xff]
    %v381 = vld [vmem:[#allocation8 + $0x170] sm:$0xff]
    %v382 = vld [vmem:[#allocation8 + $0x178] sm:$0xff]
    %v383 = vld [vmem:[#allocation8 + $0x180] sm:$0xff]
    %v384 = vld [vmem:[#allocation8 + $0x188] sm:$0xff]
    %v385 = vld [vmem:[#allocation8 + $0x190] sm:$0xff]
    %v386 = vld [vmem:[#allocation8 + $0x198] sm:$0xff]
    %v387 = vld [vmem:[#allocation8 + $0x1a0] sm:$0xff]
    %v388 = vld [vmem:[#allocation8 + $0x1a8] sm:$0xff]
    %v389 = vld [vmem:[#allocation8 + $0x1b0] sm:$0xff]
    %v390 = vld [vmem:[#allocation8 + $0x1b8] sm:$0xff]
    %v391 = vld [vmem:[#allocation8 + $0x1c0] sm:$0xff]
    %v392 = vld [vmem:[#allocation8 + $0x1c8] sm:$0xff]
    %v393 = vld [vmem:[#allocation8 + $0x1d0] sm:$0xff]
    %v394 = vld [vmem:[#allocation8 + $0x1d8] sm:$0xff]
    %v395 = vld [vmem:[#allocation8 + $0x1e0] sm:$0xff]
    %v396 = vld [vmem:[#allocation8 + $0x1e8] sm:$0xff]
    %v397 = vld [vmem:[#allocation8 + $0x1f0] sm:$0xff]
    %v398 = vld [vmem:[#allocation8 + $0x1f8] sm:$0xff]
    %v399 = vld [vmem:[#allocation8 + $0x200] sm:$0xff]
    %v400 = vld [vmem:[#allocation8 + $0x208] sm:$0xff]
    %v401 = vld [vmem:[#allocation8 + $0x210] sm:$0xff]
    %v402 = vld [vmem:[#allocation8 + $0x218] sm:$0xff]
    %v403 = vld [vmem:[#allocation8 + $0x220] sm:$0xff]
    %v404 = vld [vmem:[#allocation8 + $0x228] sm:$0xff]
    %v405 = vld [vmem:[#allocation8 + $0x230] sm:$0xff]
    %v406 = vld [vmem:[#allocation8 + $0x238] sm:$0xff]
    %v407 = vld [vmem:[#allocation8 + $0x240] sm:$0xff]
    %v408 = vld [vmem:[#allocation8 + $0x248] sm:$0xff]
    %v409 = vld [vmem:[#allocation8 + $0x250] sm:$0xff]
    %v410 = vld [vmem:[#allocation8 + $0x258] sm:$0xff]
    %v411 = vld [vmem:[#allocation8 + $0x260] sm:$0xff]
    %v412 = vld [vmem:[#allocation8 + $0x268] sm:$0xff]
    %v413 = vld [vmem:[#allocation8 + $0x270] sm:$0xff]
    %v414 = vld [vmem:[#allocation8 + $0x278] sm:$0xff]
    %v415 = vld [vmem:[#allocation8 + $0x280] sm:$0xff]
    %v416 = vld [vmem:[#allocation8 + $0x288] sm:$0xff]
    %v417 = vld [vmem:[#allocation8 + $0x290] sm:$0xff]
    %v418 = vld [vmem:[#allocation8 + $0x298] sm:$0xff]
    %v419 = vld [vmem:[#allocation8 + $0x2a0] sm:$0xff]
    %v420 = vld [vmem:[#allocation8 + $0x2a8] sm:$0xff]
    %v421 = vld [vmem:[#allocation8 + $0x2b0] sm:$0xff]
    %v422 = vld [vmem:[#allocation8 + $0x2b8] sm:$0xff]
    %v423 = vld [vmem:[#allocation8 + $0x2c0] sm:$0xff]
    %v424 = vld [vmem:[#allocation8 + $0x2c8] sm:$0xff]
    %v425 = vld [vmem:[#allocation8 + $0x2d0] sm:$0xff]
    %v426 = vld [vmem:[#allocation8 + $0x2d8] sm:$0xff]
    %v427 = vld [vmem:[#allocation8 + $0x2e0] sm:$0xff]
    %v428 = vld [vmem:[#allocation8 + $0x2e8] sm:$0xff]
    %v429 = vld [vmem:[#allocation8 + $0x2f0] sm:$0xff]
    %v430 = vld [vmem:[#allocation8 + $0x2f8] sm:$0xff]
    %v431 = vld [vmem:[#allocation8 + $0x300] sm:$0xff]
    %v432 = vld [vmem:[#allocation8 + $0x308] sm:$0xff]
    %v433 = vld [vmem:[#allocation8 + $0x310] sm:$0xff]
    %v434 = vld [vmem:[#allocation8 + $0x318] sm:$0xff]
    %v435 = vld [vmem:[#allocation8 + $0x320] sm:$0xff]
    %v436 = vld [vmem:[#allocation8 + $0x328] sm:$0xff]
    %v437 = vld [vmem:[#allocation8 + $0x330] sm:$0xff]
    %v438 = vld [vmem:[#allocation8 + $0x338] sm:$0xff]
    %v439 = vld [vmem:[#allocation8 + $0x340] sm:$0xff]
    %v440 = vld [vmem:[#allocation8 + $0x348] sm:$0xff]
    %v441 = vld [vmem:[#allocation8 + $0x350] sm:$0xff]
    %v442 = vld [vmem:[#allocation8 + $0x358] sm:$0xff]
    %v443 = vld [vmem:[#allocation8 + $0x360] sm:$0xff]
    %v444 = vld [vmem:[#allocation8 + $0x368] sm:$0xff]
    %v445 = vld [vmem:[#allocation8 + $0x370] sm:$0xff]
    %v446 = vld [vmem:[#allocation8 + $0x378] sm:$0xff]
    %v447 = vld [vmem:[#allocation8 + $0x380] sm:$0xff]
    %v448 = vld [vmem:[#allocation8 + $0x388] sm:$0xff]
    %v449 = vld [vmem:[#allocation8 + $0x390] sm:$0xff]
    %v450 = vld [vmem:[#allocation8 + $0x398] sm:$0xff]
    %v451 = vld [vmem:[#allocation8 + $0x3a0] sm:$0xff]
    %v452 = vld [vmem:[#allocation8 + $0x3a8] sm:$0xff]
    %v453 = vld [vmem:[#allocation8 + $0x3b0] sm:$0xff]
    %v454 = vld [vmem:[#allocation8 + $0x3b8] sm:$0xff]
    %v455 = vld [vmem:[#allocation8 + $0x3c0] sm:$0xff]
    %v456 = vld [vmem:[#allocation8 + $0x3c8] sm:$0xff]
    %v457 = vld [vmem:[#allocation8 + $0x3d0] sm:$0xff]
    %v458 = vld [vmem:[#allocation8 + $0x3d8] sm:$0xff]
    %v459 = vld [vmem:[#allocation8 + $0x3e0] sm:$0xff]
    %v460 = vld [vmem:[#allocation8 + $0x3e8] sm:$0xff]
    %v461 = vld [vmem:[#allocation8 + $0x3f0] sm:$0xff]
    %v462 = vld [vmem:[#allocation8 + $0x3f8] sm:$0xff]
    %v463 = vld [vmem:[#allocation8 + $0x400] sm:$0xff]
    %v464 = vld [vmem:[#allocation8 + $0x408] sm:$0xff]
    %v465 = vld [vmem:[#allocation8 + $0x410] sm:$0xff]
    %v466 = vld [vmem:[#allocation8 + $0x418] sm:$0xff]
    %v467 = vld [vmem:[#allocation8 + $0x420] sm:$0xff]
    %v468 = vld [vmem:[#allocation8 + $0x428] sm:$0xff]
    %v469 = vld [vmem:[#allocation8 + $0x430] sm:$0xff]
    %v470 = vld [vmem:[#allocation8 + $0x438] sm:$0xff]
    %v471 = vld [vmem:[#allocation8 + $0x440] sm:$0xff]
    %v472 = vld [vmem:[#allocation8 + $0x448] sm:$0xff]
    %v473 = vld [vmem:[#allocation8 + $0x450] sm:$0xff]
    %v474 = vld [vmem:[#allocation8 + $0x458] sm:$0xff]
    %v475 = vld [vmem:[#allocation8 + $0x460] sm:$0xff]
    %v476 = vld [vmem:[#allocation8 + $0x468] sm:$0xff]
    %v477 = vld [vmem:[#allocation8 + $0x470] sm:$0xff]
    %v478 = vld [vmem:[#allocation8 + $0x478] sm:$0xff]
    %v479 = vld [vmem:[#allocation8 + $0x480] sm:$0xff]
    %v480 = vld [vmem:[#allocation8 + $0x488] sm:$0xff]
    %v481 = vld [vmem:[#allocation8 + $0x490] sm:$0xff]
    %v482 = vld [vmem:[#allocation8 + $0x498] sm:$0xff]
    %v483 = vld [vmem:[#allocation8 + $0x4a0] sm:$0xff]
    %v484 = vld [vmem:[#allocation8 + $0x4a8] sm:$0xff]
    %v485 = vld [vmem:[#allocation8 + $0x4b0] sm:$0xff]
    %v486 = vld [vmem:[#allocation8 + $0x4b8] sm:$0xff]
    %v487 = vld [vmem:[#allocation8 + $0x4c0] sm:$0xff]
    %v488 = vld [vmem:[#allocation8 + $0x4c8] sm:$0xff]
    %v489 = vld [vmem:[#allocation8 + $0x4d0] sm:$0xff]
    %v490 = vld [vmem:[#allocation8 + $0x4d8] sm:$0xff]
    %v491 = vld [vmem:[#allocation8 + $0x4e0] sm:$0xff]
    %v492 = vld [vmem:[#allocation8 + $0x4e8] sm:$0xff]
    %v493 = vld [vmem:[#allocation8 + $0x4f0] sm:$0xff]
    %v494 = vld [vmem:[#allocation8 + $0x4f8] sm:$0xff]
    %v495 = vld [vmem:[#allocation8 + $0x500] sm:$0xff]
    %v496 = vld [vmem:[#allocation8 + $0x508] sm:$0xff]
    %v497 = vld [vmem:[#allocation8 + $0x510] sm:$0xff]
    %v498 = vld [vmem:[#allocation8 + $0x518] sm:$0xff]
    %v499 = vld [vmem:[#allocation8 + $0x520] sm:$0xff]
    %v500 = vld [vmem:[#allocation8 + $0x528] sm:$0xff]
    %v501 = vld [vmem:[#allocation8 + $0x530] sm:$0xff]
    %v502 = vld [vmem:[#allocation8 + $0x538] sm:$0xff]
    %v503 = vld [vmem:[#allocation8 + $0x540] sm:$0xff]
    %v504 = vld [vmem:[#allocation8 + $0x548] sm:$0xff]
    %v505 = vld [vmem:[#allocation8 + $0x550] sm:$0xff]
    %v506 = vld [vmem:[#allocation8 + $0x558] sm:$0xff]
    %v507 = vld [vmem:[#allocation8 + $0x560] sm:$0xff]
    %v508 = vld [vmem:[#allocation8 + $0x568] sm:$0xff]
    %v509 = vld [vmem:[#allocation8 + $0x570] sm:$0xff]
    %v510 = vld [vmem:[#allocation8 + $0x578] sm:$0xff]
    %v511 = vld [vmem:[#allocation8 + $0x580] sm:$0xff]
    %v512 = vld [vmem:[#allocation8 + $0x588] sm:$0xff]
    %v513 = vld [vmem:[#allocation8 + $0x590] sm:$0xff]
    %v514 = vld [vmem:[#allocation8 + $0x598] sm:$0xff]
    %v515 = vld [vmem:[#allocation8 + $0x5a0] sm:$0xff]
    %v516 = vld [vmem:[#allocation8 + $0x5a8] sm:$0xff]
    %v517 = vld [vmem:[#allocation8 + $0x5b0] sm:$0xff]
    %v518 = vld [vmem:[#allocation8 + $0x5b8] sm:$0xff]
    %v519 = vld [vmem:[#allocation8 + $0x5c0] sm:$0xff]
    %v520 = vld [vmem:[#allocation8 + $0x5c8] sm:$0xff]
    %v521 = vld [vmem:[#allocation8 + $0x5d0] sm:$0xff]
    %v522 = vld [vmem:[#allocation8 + $0x5d8] sm:$0xff]
    %v523 = vld [vmem:[#allocation8 + $0x5e0] sm:$0xff]
    %v524 = vld [vmem:[#allocation8 + $0x5e8] sm:$0xff]
    %v525 = vld [vmem:[#allocation8 + $0x5f0] sm:$0xff]
    %v526 = vld [vmem:[#allocation8 + $0x5f8] sm:$0xff]
    %v527 = vld [vmem:[#allocation8 + $0x600] sm:$0xff]
    %v528 = vld [vmem:[#allocation8 + $0x608] sm:$0xff]
    %v529 = vld [vmem:[#allocation8 + $0x610] sm:$0xff]
    %v530 = vld [vmem:[#allocation8 + $0x618] sm:$0xff]
    %v531 = vld [vmem:[#allocation8 + $0x620] sm:$0xff]
    %v532 = vld [vmem:[#allocation8 + $0x628] sm:$0xff]
    %v533 = vld [vmem:[#allocation8 + $0x630] sm:$0xff]
    %v534 = vld [vmem:[#allocation8 + $0x638] sm:$0xff]
    %v535 = vld [vmem:[#allocation8 + $0x640] sm:$0xff]
    %v536 = vld [vmem:[#allocation8 + $0x648] sm:$0xff]
    %v537 = vld [vmem:[#allocation8 + $0x650] sm:$0xff]
    %v538 = vld [vmem:[#allocation8 + $0x658] sm:$0xff]
    %v539 = vld [vmem:[#allocation8 + $0x660] sm:$0xff]
    %v540 = vld [vmem:[#allocation8 + $0x668] sm:$0xff]
    %v541 = vld [vmem:[#allocation8 + $0x670] sm:$0xff]
    %v542 = vld [vmem:[#allocation8 + $0x678] sm:$0xff]
    %v543 = vld [vmem:[#allocation8 + $0x680] sm:$0xff]
    %v544 = vld [vmem:[#allocation8 + $0x688] sm:$0xff]
    %v545 = vld [vmem:[#allocation8 + $0x690] sm:$0xff]
    %v546 = vld [vmem:[#allocation8 + $0x698] sm:$0xff]
    %v547 = vld [vmem:[#allocation8 + $0x6a0] sm:$0xff]
    %v548 = vld [vmem:[#allocation8 + $0x6a8] sm:$0xff]
    %v549 = vld [vmem:[#allocation8 + $0x6b0] sm:$0xff]
    %v550 = vld [vmem:[#allocation8 + $0x6b8] sm:$0xff]
    %v551 = vld [vmem:[#allocation8 + $0x6c0] sm:$0xff]
    %v552 = vld [vmem:[#allocation8 + $0x6c8] sm:$0xff]
    %v553 = vld [vmem:[#allocation8 + $0x6d0] sm:$0xff]
    %v554 = vld [vmem:[#allocation8 + $0x6d8] sm:$0xff]
    %v555 = vld [vmem:[#allocation8 + $0x6e0] sm:$0xff]
    %v556 = vld [vmem:[#allocation8 + $0x6e8] sm:$0xff]
    %v557 = vld [vmem:[#allocation8 + $0x6f0] sm:$0xff]
    %v558 = vld [vmem:[#allocation8 + $0x6f8] sm:$0xff]
    %v559 = vld [vmem:[#allocation8 + $0x700] sm:$0xff]
    %v560 = vld [vmem:[#allocation8 + $0x708] sm:$0xff]
    %v561 = vld [vmem:[#allocation8 + $0x710] sm:$0xff]
    %v562 = vld [vmem:[#allocation8 + $0x718] sm:$0xff]
    %v563 = vld [vmem:[#allocation8 + $0x720] sm:$0xff]
    %v564 = vld [vmem:[#allocation8 + $0x728] sm:$0xff]
    %v565 = vld [vmem:[#allocation8 + $0x730] sm:$0xff]
    %v566 = vld [vmem:[#allocation8 + $0x738] sm:$0xff]
    %v567 = vld [vmem:[#allocation8 + $0x740] sm:$0xff]
    %v568 = vld [vmem:[#allocation8 + $0x748] sm:$0xff]
    %v569 = vld [vmem:[#allocation8 + $0x750] sm:$0xff]
    %v570 = vld [vmem:[#allocation8 + $0x758] sm:$0xff]
    %v571 = vld [vmem:[#allocation8 + $0x760] sm:$0xff]
    %v572 = vld [vmem:[#allocation8 + $0x768] sm:$0xff]
    %v573 = vld [vmem:[#allocation8 + $0x770] sm:$0xff]
    %v574 = vld [vmem:[#allocation8 + $0x778] sm:$0xff]
    %v575 = vld [vmem:[#allocation8 + $0x780] sm:$0xff]
    %v576 = vld [vmem:[#allocation8 + $0x788] sm:$0xff]
    %v577 = vld [vmem:[#allocation8 + $0x790] sm:$0xff]
    %v578 = vld [vmem:[#allocation8 + $0x798] sm:$0xff]
    %v579 = vld [vmem:[#allocation8 + $0x7a0] sm:$0xff]
    %v580 = vld [vmem:[#allocation8 + $0x7a8] sm:$0xff]
    %v581 = vld [vmem:[#allocation8 + $0x7b0] sm:$0xff]
    %v582 = vld [vmem:[#allocation8 + $0x7b8] sm:$0xff]
    %v583 = vld [vmem:[#allocation8 + $0x7c0] sm:$0xff]
    %v584 = vld [vmem:[#allocation8 + $0x7c8] sm:$0xff]
    %v585 = vld [vmem:[#allocation8 + $0x7d0] sm:$0xff]
    %v586 = vld [vmem:[#allocation8 + $0x7d8] sm:$0xff]
    %v587 = vld [vmem:[#allocation8 + $0x7e0] sm:$0xff]
    %v588 = vld [vmem:[#allocation8 + $0x7e8] sm:$0xff]
    %v589 = vld [vmem:[#allocation8 + $0x7f0] sm:$0xff]
    %v590 = vld [vmem:[#allocation8 + $0x7f8] sm:$0xff]
    %v592 = vlaneseq
    %v593 = vshrl.u32 %v592, 7
    %v594 = vsub.s32 0, %v593
    %v595 = vrot.slane %v92, %v594
    %v596 = vlaneseq
    %v597 = vshrl.u32 %v596, 7
    %v598 = vsub.s32 1, %v597
    %v599 = vrot.slane %v92, %v598
    %v600 = vlaneseq
    %v601 = vshrl.u32 %v600, 7
    %v602 = vsub.s32 2, %v601
    %v603 = vrot.slane %v92, %v602
    %v604 = vlaneseq
    %v605 = vshrl.u32 %v604, 7
    %v606 = vsub.s32 3, %v605
    %v607 = vrot.slane %v92, %v606
    %v608 = vlaneseq
    %v609 = vshrl.u32 %v608, 7
    %v610 = vsub.s32 4, %v609
    %v611 = vrot.slane %v92, %v610
    %v612 = vlaneseq
    %v613 = vshrl.u32 %v612, 7
    %v614 = vsub.s32 5, %v613
    %v615 = vrot.slane %v92, %v614
    %v616 = vlaneseq
    %v617 = vshrl.u32 %v616, 7
    %v618 = vsub.s32 6, %v617
    %v619 = vrot.slane %v92, %v618
    %v620 = vlaneseq
    %v621 = vshrl.u32 %v620, 7
    %v622 = vsub.s32 7, %v621
    %v623 = vrot.slane %v92, %v622
    %632 = vmatprep.subr.mxu0 %v336
    %633 = vmatpush1.msra.mxu0 %v335
    %634 = vmatprep.subr.mxu0 %v344
    %635 = vmatpush1.msra.mxu0 %v343
    %636 = vmatprep.subr.mxu0 %v352
    %637 = vmatpush1.msra.mxu0 %v351
    %638 = vmatprep.subr.mxu0 %v360
    %639 = vmatpush1.msra.mxu0 %v359
    %640 = vmatprep.subr.mxu0 %v368
    %641 = vmatpush1.msra.mxu0 %v367
    %642 = vmatprep.subr.mxu0 %v376
    %643 = vmatpush1.msra.mxu0 %v375
    %644 = vmatprep.subr.mxu0 %v384
    %645 = vmatpush1.msra.mxu0 %v383
    %646 = vmatprep.subr.mxu0 %v392
    %647 = vmatpush1.msra.mxu0 %v391
    %648 = vmatprep.subr.mxu0 %v400
    %649 = vmatpush1.msra.mxu0 %v399
    %650 = vmatprep.subr.mxu0 %v408
    %651 = vmatpush1.msra.mxu0 %v407
    %652 = vmatprep.subr.mxu0 %v416
    %653 = vmatpush1.msra.mxu0 %v415
    %654 = vmatprep.subr.mxu0 %v424
    %655 = vmatpush1.msra.mxu0 %v423
    %656 = vmatprep.subr.mxu0 %v432
    %657 = vmatpush1.msra.mxu0 %v431
    %658 = vmatprep.subr.mxu0 %v440
    %659 = vmatpush1.msra.mxu0 %v439
    %660 = vmatprep.subr.mxu0 %v448
    %661 = vmatpush1.msra.mxu0 %v447
    %662 = vmatprep.subr.mxu0 %v456
    %663 = vmatpush1.msra.mxu0 %v455
    %664 = vmatprep.subr.mxu0 %v464
    %665 = vmatpush1.msra.mxu0 %v463
    %666 = vmatprep.subr.mxu0 %v472
    %667 = vmatpush1.msra.mxu0 %v471
    %668 = vmatprep.subr.mxu0 %v480
    %669 = vmatpush1.msra.mxu0 %v479
    %670 = vmatprep.subr.mxu0 %v488
    %671 = vmatpush1.msra.mxu0 %v487
    %672 = vmatprep.subr.mxu0 %v496
    %673 = vmatpush1.msra.mxu0 %v495
    %674 = vmatprep.subr.mxu0 %v504
    %675 = vmatpush1.msra.mxu0 %v503
    %676 = vmatprep.subr.mxu0 %v512
    %677 = vmatpush1.msra.mxu0 %v511
    %678 = vmatprep.subr.mxu0 %v520
    %679 = vmatpush1.msra.mxu0 %v519
    %680 = vmatprep.subr.mxu0 %v528
    %681 = vmatpush1.msra.mxu0 %v527
    %682 = vmatprep.subr.mxu0 %v536
    %683 = vmatpush1.msra.mxu0 %v535
    %684 = vmatprep.subr.mxu0 %v544
    %685 = vmatpush1.msra.mxu0 %v543
    %686 = vmatprep.subr.mxu0 %v552
    %687 = vmatpush1.msra.mxu0 %v551
    %688 = vmatprep.subr.mxu0 %v560
    %689 = vmatpush1.msra.mxu0 %v559
    %690 = vmatprep.subr.mxu0 %v568
    %691 = vmatpush1.msra.mxu0 %v567
    %692 = vmatprep.subr.mxu0 %v576
    %693 = vmatpush1.msra.mxu0 %v575
    %694 = vmatprep.subr.mxu0 %v584
    %695 = vmatpush1.msra.mxu0 %v583
    %696 = vmatprep.mubr.f32.mxu0 %v334
    %697 = vmatmul.mubr.f32.gmra.mrb[0].mxu0 %v333
    %v698 = vpop.f32.mrb[0].mxu0
    %v699 = vadd.f32 %v595, %v698
    %v700 = vpop.f32.mrb[0].mxu0
    %v701 = vadd.f32 %v599, %v700
    %702 = vdwg.mxu0
    %703 = vmatprep.subr.mxu0 %v338
    %704 = vmatpush1.msra.mxu0 %v337
    %705 = vmatprep.subr.mxu0 %v346
    %706 = vmatpush1.msra.mxu0 %v345
    %707 = vmatprep.subr.mxu0 %v354
    %708 = vmatpush1.msra.mxu0 %v353
    %709 = vmatprep.subr.mxu0 %v362
    %710 = vmatpush1.msra.mxu0 %v361
    %711 = vmatprep.subr.mxu0 %v370
    %712 = vmatpush1.msra.mxu0 %v369
    %713 = vmatprep.subr.mxu0 %v378
    %714 = vmatpush1.msra.mxu0 %v377
    %715 = vmatprep.subr.mxu0 %v386
    %716 = vmatpush1.msra.mxu0 %v385
    %717 = vmatprep.subr.mxu0 %v394
    %718 = vmatpush1.msra.mxu0 %v393
    %719 = vmatprep.subr.mxu0 %v402
    %720 = vmatpush1.msra.mxu0 %v401
    %721 = vmatprep.subr.mxu0 %v410
    %722 = vmatpush1.msra.mxu0 %v409
    %723 = vmatprep.subr.mxu0 %v418
    %724 = vmatpush1.msra.mxu0 %v417
    %725 = vmatprep.subr.mxu0 %v426
    %726 = vmatpush1.msra.mxu0 %v425
    %727 = vmatprep.subr.mxu0 %v434
    %728 = vmatpush1.msra.mxu0 %v433
    %729 = vmatprep.subr.mxu0 %v442
    %730 = vmatpush1.msra.mxu0 %v441
    %731 = vmatprep.subr.mxu0 %v450
    %732 = vmatpush1.msra.mxu0 %v449
    %733 = vmatprep.subr.mxu0 %v458
    %734 = vmatpush1.msra.mxu0 %v457
    %735 = vmatprep.subr.mxu0 %v466
    %736 = vmatpush1.msra.mxu0 %v465
    %737 = vmatprep.subr.mxu0 %v474
    %738 = vmatpush1.msra.mxu0 %v473
    %739 = vmatprep.subr.mxu0 %v482
    %740 = vmatpush1.msra.mxu0 %v481
    %741 = vmatprep.subr.mxu0 %v490
    %742 = vmatpush1.msra.mxu0 %v489
    %743 = vmatprep.subr.mxu0 %v498
    %744 = vmatpush1.msra.mxu0 %v497
    %745 = vmatprep.subr.mxu0 %v506
    %746 = vmatpush1.msra.mxu0 %v505
    %747 = vmatprep.subr.mxu0 %v514
    %748 = vmatpush1.msra.mxu0 %v513
    %749 = vmatprep.subr.mxu0 %v522
    %750 = vmatpush1.msra.mxu0 %v521
    %751 = vmatprep.subr.mxu0 %v530
    %752 = vmatpush1.msra.mxu0 %v529
    %753 = vmatprep.subr.mxu0 %v538
    %754 = vmatpush1.msra.mxu0 %v537
    %755 = vmatprep.subr.mxu0 %v546
    %756 = vmatpush1.msra.mxu0 %v545
    %757 = vmatprep.subr.mxu0 %v554
    %758 = vmatpush1.msra.mxu0 %v553
    %759 = vmatprep.subr.mxu0 %v562
    %760 = vmatpush1.msra.mxu0 %v561
    %761 = vmatprep.subr.mxu0 %v570
    %762 = vmatpush1.msra.mxu0 %v569
    %763 = vmatprep.subr.mxu0 %v578
    %764 = vmatpush1.msra.mxu0 %v577
    %765 = vmatprep.subr.mxu0 %v586
    %766 = vmatpush1.msra.mxu0 %v585
    %767 = vmatprep.mubr.f32.mxu0 %v334
    %768 = vmatmul.mubr.f32.gmra.mrb[0].mxu0 %v333
    %v769 = vpop.f32.mrb[0].mxu0
    %v770 = vadd.f32 %v603, %v769
    %v771 = vpop.f32.mrb[0].mxu0
    %v772 = vadd.f32 %v607, %v771
    %773 = vdwg.mxu0
    %774 = vmatprep.subr.mxu0 %v340
    %775 = vmatpush1.msra.mxu0 %v339
    %776 = vmatprep.subr.mxu0 %v348
    %777 = vmatpush1.msra.mxu0 %v347
    %778 = vmatprep.subr.mxu0 %v356
    %779 = vmatpush1.msra.mxu0 %v355
    %780 = vmatprep.subr.mxu0 %v364
    %781 = vmatpush1.msra.mxu0 %v363
    %782 = vmatprep.subr.mxu0 %v372
    %783 = vmatpush1.msra.mxu0 %v371
    %784 = vmatprep.subr.mxu0 %v380
    %785 = vmatpush1.msra.mxu0 %v379
    %786 = vmatprep.subr.mxu0 %v388
    %787 = vmatpush1.msra.mxu0 %v387
    %788 = vmatprep.subr.mxu0 %v396
    %789 = vmatpush1.msra.mxu0 %v395
    %790 = vmatprep.subr.mxu0 %v404
    %791 = vmatpush1.msra.mxu0 %v403
    %792 = vmatprep.subr.mxu0 %v412
    %793 = vmatpush1.msra.mxu0 %v411
    %794 = vmatprep.subr.mxu0 %v420
    %795 = vmatpush1.msra.mxu0 %v419
    %796 = vmatprep.subr.mxu0 %v428
    %797 = vmatpush1.msra.mxu0 %v427
    %798 = vmatprep.subr.mxu0 %v436
    %799 = vmatpush1.msra.mxu0 %v435
    %800 = vmatprep.subr.mxu0 %v444
    %801 = vmatpush1.msra.mxu0 %v443
    %802 = vmatprep.subr.mxu0 %v452
    %803 = vmatpush1.msra.mxu0 %v451
    %804 = vmatprep.subr.mxu0 %v460
    %805 = vmatpush1.msra.mxu0 %v459
    %806 = vmatprep.subr.mxu0 %v468
    %807 = vmatpush1.msra.mxu0 %v467
    %808 = vmatprep.subr.mxu0 %v476
    %809 = vmatpush1.msra.mxu0 %v475
    %810 = vmatprep.subr.mxu0 %v484
    %811 = vmatpush1.msra.mxu0 %v483
    %812 = vmatprep.subr.mxu0 %v492
    %813 = vmatpush1.msra.mxu0 %v491
    %814 = vmatprep.subr.mxu0 %v500
    %815 = vmatpush1.msra.mxu0 %v499
    %816 = vmatprep.subr.mxu0 %v508
    %817 = vmatpush1.msra.mxu0 %v507
    %818 = vmatprep.subr.mxu0 %v516
    %819 = vmatpush1.msra.mxu0 %v515
    %820 = vmatprep.subr.mxu0 %v524
    %821 = vmatpush1.msra.mxu0 %v523
    %822 = vmatprep.subr.mxu0 %v532
    %823 = vmatpush1.msra.mxu0 %v531
    %824 = vmatprep.subr.mxu0 %v540
    %825 = vmatpush1.msra.mxu0 %v539
    %826 = vmatprep.subr.mxu0 %v548
    %827 = vmatpush1.msra.mxu0 %v547
    %828 = vmatprep.subr.mxu0 %v556
    %829 = vmatpush1.msra.mxu0 %v555
    %830 = vmatprep.subr.mxu0 %v564
    %831 = vmatpush1.msra.mxu0 %v563
    %832 = vmatprep.subr.mxu0 %v572
    %833 = vmatpush1.msra.mxu0 %v571
    %834 = vmatprep.subr.mxu0 %v580
    %835 = vmatpush1.msra.mxu0 %v579
    %836 = vmatprep.subr.mxu0 %v588
    %837 = vmatpush1.msra.mxu0 %v587
    %838 = vmatprep.mubr.f32.mxu0 %v334
    %839 = vmatmul.mubr.f32.gmra.mrb[0].mxu0 %v333
    %v840 = vpop.f32.mrb[0].mxu0
    %v841 = vadd.f32 %v611, %v840
    %v842 = vpop.f32.mrb[0].mxu0
    %v843 = vadd.f32 %v615, %v842
    %844 = vdwg.mxu0
    %845 = vmatprep.subr.mxu0 %v342
    %846 = vmatpush1.msra.mxu0 %v341
    %847 = vmatprep.subr.mxu0 %v350
    %848 = vmatpush1.msra.mxu0 %v349
    %849 = vmatprep.subr.mxu0 %v358
    %850 = vmatpush1.msra.mxu0 %v357
    %851 = vmatprep.subr.mxu0 %v366
    %852 = vmatpush1.msra.mxu0 %v365
    %853 = vmatprep.subr.mxu0 %v374
    %854 = vmatpush1.msra.mxu0 %v373
    %855 = vmatprep.subr.mxu0 %v382
    %856 = vmatpush1.msra.mxu0 %v381
    %857 = vmatprep.subr.mxu0 %v390
    %858 = vmatpush1.msra.mxu0 %v389
    %859 = vmatprep.subr.mxu0 %v398
    %860 = vmatpush1.msra.mxu0 %v397
    %861 = vmatprep.subr.mxu0 %v406
    %862 = vmatpush1.msra.mxu0 %v405
    %863 = vmatprep.subr.mxu0 %v414
    %864 = vmatpush1.msra.mxu0 %v413
    %865 = vmatprep.subr.mxu0 %v422
    %866 = vmatpush1.msra.mxu0 %v421
    %867 = vmatprep.subr.mxu0 %v430
    %868 = vmatpush1.msra.mxu0 %v429
    %869 = vmatprep.subr.mxu0 %v438
    %870 = vmatpush1.msra.mxu0 %v437
    %871 = vmatprep.subr.mxu0 %v446
    %872 = vmatpush1.msra.mxu0 %v445
    %873 = vmatprep.subr.mxu0 %v454
    %874 = vmatpush1.msra.mxu0 %v453
    %875 = vmatprep.subr.mxu0 %v462
    %876 = vmatpush1.msra.mxu0 %v461
    %877 = vmatprep.subr.mxu0 %v470
    %878 = vmatpush1.msra.mxu0 %v469
    %879 = vmatprep.subr.mxu0 %v478
    %880 = vmatpush1.msra.mxu0 %v477
    %881 = vmatprep.subr.mxu0 %v486
    %882 = vmatpush1.msra.mxu0 %v485
    %883 = vmatprep.subr.mxu0 %v494
    %884 = vmatpush1.msra.mxu0 %v493
    %885 = vmatprep.subr.mxu0 %v502
    %886 = vmatpush1.msra.mxu0 %v501
    %887 = vmatprep.subr.mxu0 %v510
    %888 = vmatpush1.msra.mxu0 %v509
    %889 = vmatprep.subr.mxu0 %v518
    %890 = vmatpush1.msra.mxu0 %v517
    %891 = vmatprep.subr.mxu0 %v526
    %892 = vmatpush1.msra.mxu0 %v525
    %893 = vmatprep.subr.mxu0 %v534
    %894 = vmatpush1.msra.mxu0 %v533
    %895 = vmatprep.subr.mxu0 %v542
    %896 = vmatpush1.msra.mxu0 %v541
    %897 = vmatprep.subr.mxu0 %v550
    %898 = vmatpush1.msra.mxu0 %v549
    %899 = vmatprep.subr.mxu0 %v558
    %900 = vmatpush1.msra.mxu0 %v557
    %901 = vmatprep.subr.mxu0 %v566
    %902 = vmatpush1.msra.mxu0 %v565
    %903 = vmatprep.subr.mxu0 %v574
    %904 = vmatpush1.msra.mxu0 %v573
    %905 = vmatprep.subr.mxu0 %v582
    %906 = vmatpush1.msra.mxu0 %v581
    %907 = vmatprep.subr.mxu0 %v590
    %908 = vmatpush1.msra.mxu0 %v589
    %909 = vmatprep.mubr.f32.mxu0 %v334
    %910 = vmatmul.mubr.f32.gmra.mrb[0].mxu0 %v333
    %v911 = vpop.f32.mrb[0].mxu0
    %v912 = vadd.f32 %v619, %v911
    %v913 = vpop.f32.mrb[0].mxu0
    %v914 = vadd.f32 %v623, %v913
    %915 = vdwg.mxu0
    %v916 = vmax.f32 %v699, 0.0
    %v917 = vmax.f32 %v701, 0.0
    %v918 = vmax.f32 %v770, 0.0
    %v919 = vmax.f32 %v772, 0.0
    %v920 = vmax.f32 %v841, 0.0
    %v921 = vmax.f32 %v843, 0.0
    %v922 = vmax.f32 %v912, 0.0
    %v923 = vmax.f32 %v914, 0.0
    %v924 = vld [vmem:[#allocation10] sm:$0xff]
    %v925 = vld [vmem:[#allocation10 + $0x8] sm:$0xff]
    %v926 = vld [vmem:[#allocation10 + $0x10] sm:$0xff]
    %v927 = vld [vmem:[#allocation10 + $0x18] sm:$0xff]
    %v928 = vld [vmem:[#allocation10 + $0x20] sm:$0xff]
    %v929 = vld [vmem:[#allocation10 + $0x28] sm:$0xff]
    %v930 = vld [vmem:[#allocation10 + $0x30] sm:$0xff]
    %v931 = vld [vmem:[#allocation10 + $0x38] sm:$0xff]
    %v932 = vld [vmem:[#allocation10 + $0x40] sm:$0xff]
    %v933 = vld [vmem:[#allocation10 + $0x48] sm:$0xff]
    %v934 = vld [vmem:[#allocation10 + $0x50] sm:$0xff]
    %v935 = vld [vmem:[#allocation10 + $0x58] sm:$0xff]
    %v936 = vld [vmem:[#allocation10 + $0x60] sm:$0xff]
    %v937 = vld [vmem:[#allocation10 + $0x68] sm:$0xff]
    %v938 = vld [vmem:[#allocation10 + $0x70] sm:$0xff]
    %v939 = vld [vmem:[#allocation10 + $0x78] sm:$0xff]
    %v940 = vld [vmem:[#allocation10 + $0x80] sm:$0xff]
    %v941 = vld [vmem:[#allocation10 + $0x88] sm:$0xff]
    %v942 = vld [vmem:[#allocation10 + $0x90] sm:$0xff]
    %v943 = vld [vmem:[#allocation10 + $0x98] sm:$0xff]
    %v944 = vld [vmem:[#allocation10 + $0xa0] sm:$0xff]
    %v945 = vld [vmem:[#allocation10 + $0xa8] sm:$0xff]
    %v946 = vld [vmem:[#allocation10 + $0xb0] sm:$0xff]
    %v947 = vld [vmem:[#allocation10 + $0xb8] sm:$0xff]
    %v948 = vld [vmem:[#allocation10 + $0xc0] sm:$0xff]
    %v949 = vld [vmem:[#allocation10 + $0xc8] sm:$0xff]
    %v950 = vld [vmem:[#allocation10 + $0xd0] sm:$0xff]
    %v951 = vld [vmem:[#allocation10 + $0xd8] sm:$0xff]
    %v952 = vld [vmem:[#allocation10 + $0xe0] sm:$0xff]
    %v953 = vld [vmem:[#allocation10 + $0xe8] sm:$0xff]
    %v954 = vld [vmem:[#allocation10 + $0xf0] sm:$0xff]
    %v955 = vld [vmem:[#allocation10 + $0xf8] sm:$0xff]
    %v956 = vld [vmem:[#allocation10 + $0x100] sm:$0xff]
    %v957 = vld [vmem:[#allocation10 + $0x108] sm:$0xff]
    %v958 = vld [vmem:[#allocation10 + $0x110] sm:$0xff]
    %v959 = vld [vmem:[#allocation10 + $0x118] sm:$0xff]
    %v960 = vld [vmem:[#allocation10 + $0x120] sm:$0xff]
    %v961 = vld [vmem:[#allocation10 + $0x128] sm:$0xff]
    %v962 = vld [vmem:[#allocation10 + $0x130] sm:$0xff]
    %v963 = vld [vmem:[#allocation10 + $0x138] sm:$0xff]
    %v964 = vld [vmem:[#allocation10 + $0x140] sm:$0xff]
    %v965 = vld [vmem:[#allocation10 + $0x148] sm:$0xff]
    %v966 = vld [vmem:[#allocation10 + $0x150] sm:$0xff]
    %v967 = vld [vmem:[#allocation10 + $0x158] sm:$0xff]
    %v968 = vld [vmem:[#allocation10 + $0x160] sm:$0xff]
    %v969 = vld [vmem:[#allocation10 + $0x168] sm:$0xff]
    %v970 = vld [vmem:[#allocation10 + $0x170] sm:$0xff]
    %v971 = vld [vmem:[#allocation10 + $0x178] sm:$0xff]
    %v972 = vld [vmem:[#allocation10 + $0x180] sm:$0xff]
    %v973 = vld [vmem:[#allocation10 + $0x188] sm:$0xff]
    %v974 = vld [vmem:[#allocation10 + $0x190] sm:$0xff]
    %v975 = vld [vmem:[#allocation10 + $0x198] sm:$0xff]
    %v976 = vld [vmem:[#allocation10 + $0x1a0] sm:$0xff]
    %v977 = vld [vmem:[#allocation10 + $0x1a8] sm:$0xff]
    %v978 = vld [vmem:[#allocation10 + $0x1b0] sm:$0xff]
    %v979 = vld [vmem:[#allocation10 + $0x1b8] sm:$0xff]
    %v980 = vld [vmem:[#allocation10 + $0x1c0] sm:$0xff]
    %v981 = vld [vmem:[#allocation10 + $0x1c8] sm:$0xff]
    %v982 = vld [vmem:[#allocation10 + $0x1d0] sm:$0xff]
    %v983 = vld [vmem:[#allocation10 + $0x1d8] sm:$0xff]
    %v984 = vld [vmem:[#allocation10 + $0x1e0] sm:$0xff]
    %v985 = vld [vmem:[#allocation10 + $0x1e8] sm:$0xff]
    %v986 = vld [vmem:[#allocation10 + $0x1f0] sm:$0xff]
    %v987 = vld [vmem:[#allocation10 + $0x1f8] sm:$0xff]
    %v988 = vld [vmem:[#allocation10 + $0x200] sm:$0xff]
    %v989 = vld [vmem:[#allocation10 + $0x208] sm:$0xff]
    %v990 = vld [vmem:[#allocation10 + $0x210] sm:$0xff]
    %v991 = vld [vmem:[#allocation10 + $0x218] sm:$0xff]
    %v992 = vld [vmem:[#allocation10 + $0x220] sm:$0xff]
    %v993 = vld [vmem:[#allocation10 + $0x228] sm:$0xff]
    %v994 = vld [vmem:[#allocation10 + $0x230] sm:$0xff]
    %v995 = vld [vmem:[#allocation10 + $0x238] sm:$0xff]
    %v996 = vld [vmem:[#allocation10 + $0x240] sm:$0xff]
    %v997 = vld [vmem:[#allocation10 + $0x248] sm:$0xff]
    %v998 = vld [vmem:[#allocation10 + $0x250] sm:$0xff]
    %v999 = vld [vmem:[#allocation10 + $0x258] sm:$0xff]
    %v1000 = vld [vmem:[#allocation10 + $0x260] sm:$0xff]
    %v1001 = vld [vmem:[#allocation10 + $0x268] sm:$0xff]
    %v1002 = vld [vmem:[#allocation10 + $0x270] sm:$0xff]
    %v1003 = vld [vmem:[#allocation10 + $0x278] sm:$0xff]
    %v1004 = vld [vmem:[#allocation10 + $0x280] sm:$0xff]
    %v1005 = vld [vmem:[#allocation10 + $0x288] sm:$0xff]
    %v1006 = vld [vmem:[#allocation10 + $0x290] sm:$0xff]
    %v1007 = vld [vmem:[#allocation10 + $0x298] sm:$0xff]
    %v1008 = vld [vmem:[#allocation10 + $0x2a0] sm:$0xff]
    %v1009 = vld [vmem:[#allocation10 + $0x2a8] sm:$0xff]
    %v1010 = vld [vmem:[#allocation10 + $0x2b0] sm:$0xff]
    %v1011 = vld [vmem:[#allocation10 + $0x2b8] sm:$0xff]
    %v1012 = vld [vmem:[#allocation10 + $0x2c0] sm:$0xff]
    %v1013 = vld [vmem:[#allocation10 + $0x2c8] sm:$0xff]
    %v1014 = vld [vmem:[#allocation10 + $0x2d0] sm:$0xff]
    %v1015 = vld [vmem:[#allocation10 + $0x2d8] sm:$0xff]
    %v1016 = vld [vmem:[#allocation10 + $0x2e0] sm:$0xff]
    %v1017 = vld [vmem:[#allocation10 + $0x2e8] sm:$0xff]
    %v1018 = vld [vmem:[#allocation10 + $0x2f0] sm:$0xff]
    %v1019 = vld [vmem:[#allocation10 + $0x2f8] sm:$0xff]
    %v1020 = vld [vmem:[#allocation10 + $0x300] sm:$0xff]
    %v1021 = vld [vmem:[#allocation10 + $0x308] sm:$0xff]
    %v1022 = vld [vmem:[#allocation10 + $0x310] sm:$0xff]
    %v1023 = vld [vmem:[#allocation10 + $0x318] sm:$0xff]
    %v1024 = vld [vmem:[#allocation10 + $0x320] sm:$0xff]
    %v1025 = vld [vmem:[#allocation10 + $0x328] sm:$0xff]
    %v1026 = vld [vmem:[#allocation10 + $0x330] sm:$0xff]
    %v1027 = vld [vmem:[#allocation10 + $0x338] sm:$0xff]
    %v1028 = vld [vmem:[#allocation10 + $0x340] sm:$0xff]
    %v1029 = vld [vmem:[#allocation10 + $0x348] sm:$0xff]
    %v1030 = vld [vmem:[#allocation10 + $0x350] sm:$0xff]
    %v1031 = vld [vmem:[#allocation10 + $0x358] sm:$0xff]
    %v1032 = vld [vmem:[#allocation10 + $0x360] sm:$0xff]
    %v1033 = vld [vmem:[#allocation10 + $0x368] sm:$0xff]
    %v1034 = vld [vmem:[#allocation10 + $0x370] sm:$0xff]
    %v1035 = vld [vmem:[#allocation10 + $0x378] sm:$0xff]
    %v1036 = vld [vmem:[#allocation10 + $0x380] sm:$0xff]
    %v1037 = vld [vmem:[#allocation10 + $0x388] sm:$0xff]
    %v1038 = vld [vmem:[#allocation10 + $0x390] sm:$0xff]
    %v1039 = vld [vmem:[#allocation10 + $0x398] sm:$0xff]
    %v1040 = vld [vmem:[#allocation10 + $0x3a0] sm:$0xff]
    %v1041 = vld [vmem:[#allocation10 + $0x3a8] sm:$0xff]
    %v1042 = vld [vmem:[#allocation10 + $0x3b0] sm:$0xff]
    %v1043 = vld [vmem:[#allocation10 + $0x3b8] sm:$0xff]
    %v1044 = vld [vmem:[#allocation10 + $0x3c0] sm:$0xff]
    %v1045 = vld [vmem:[#allocation10 + $0x3c8] sm:$0xff]
    %v1046 = vld [vmem:[#allocation10 + $0x3d0] sm:$0xff]
    %v1047 = vld [vmem:[#allocation10 + $0x3d8] sm:$0xff]
    %v1048 = vld [vmem:[#allocation10 + $0x3e0] sm:$0xff]
    %v1049 = vld [vmem:[#allocation10 + $0x3e8] sm:$0xff]
    %v1050 = vld [vmem:[#allocation10 + $0x3f0] sm:$0xff]
    %v1051 = vld [vmem:[#allocation10 + $0x3f8] sm:$0xff]
    %v1053 = vlaneseq
    %v1054 = vshrl.u32 %v1053, 7
    %v1055 = vsub.s32 0, %v1054
    %v1056 = vrot.slane %v93, %v1055
    %1058 = vmatprep.subr.mxu0 0.0
    %1059 = vmatpush1.msra.mxu0 %v924
    %1060 = vmatprep.subr.mxu0 0.0
    %1061 = vmatpush1.msra.mxu0 %v925
    %1062 = vmatprep.subr.mxu0 0.0
    %1063 = vmatpush1.msra.mxu0 %v926
    %1064 = vmatprep.subr.mxu0 0.0
    %1065 = vmatpush1.msra.mxu0 %v927
    %1066 = vmatprep.subr.mxu0 0.0
    %1067 = vmatpush1.msra.mxu0 %v928
    %1068 = vmatprep.subr.mxu0 0.0
    %1069 = vmatpush1.msra.mxu0 %v929
    %1070 = vmatprep.subr.mxu0 0.0
    %1071 = vmatpush1.msra.mxu0 %v930
    %1072 = vmatprep.subr.mxu0 0.0
    %1073 = vmatpush1.msra.mxu0 %v931
    %1074 = vmatprep.subr.mxu0 0.0
    %1075 = vmatpush1.msra.mxu0 %v932
    %1076 = vmatprep.subr.mxu0 0.0
    %1077 = vmatpush1.msra.mxu0 %v933
    %1078 = vmatprep.subr.mxu0 0.0
    %1079 = vmatpush1.msra.mxu0 %v934
    %1080 = vmatprep.subr.mxu0 0.0
    %1081 = vmatpush1.msra.mxu0 %v935
    %1082 = vmatprep.subr.mxu0 0.0
    %1083 = vmatpush1.msra.mxu0 %v936
    %1084 = vmatprep.subr.mxu0 0.0
    %1085 = vmatpush1.msra.mxu0 %v937
    %1086 = vmatprep.subr.mxu0 0.0
    %1087 = vmatpush1.msra.mxu0 %v938
    %1088 = vmatprep.subr.mxu0 0.0
    %1089 = vmatpush1.msra.mxu0 %v939
    %1090 = vmatprep.subr.mxu0 0.0
    %1091 = vmatpush1.msra.mxu0 %v940
    %1092 = vmatprep.subr.mxu0 0.0
    %1093 = vmatpush1.msra.mxu0 %v941
    %1094 = vmatprep.subr.mxu0 0.0
    %1095 = vmatpush1.msra.mxu0 %v942
    %1096 = vmatprep.subr.mxu0 0.0
    %1097 = vmatpush1.msra.mxu0 %v943
    %1098 = vmatprep.subr.mxu0 0.0
    %1099 = vmatpush1.msra.mxu0 %v944
    %1100 = vmatprep.subr.mxu0 0.0
    %1101 = vmatpush1.msra.mxu0 %v945
    %1102 = vmatprep.subr.mxu0 0.0
    %1103 = vmatpush1.msra.mxu0 %v946
    %1104 = vmatprep.subr.mxu0 0.0
    %1105 = vmatpush1.msra.mxu0 %v947
    %1106 = vmatprep.subr.mxu0 0.0
    %1107 = vmatpush1.msra.mxu0 %v948
    %1108 = vmatprep.subr.mxu0 0.0
    %1109 = vmatpush1.msra.mxu0 %v949
    %1110 = vmatprep.subr.mxu0 0.0
    %1111 = vmatpush1.msra.mxu0 %v950
    %1112 = vmatprep.subr.mxu0 0.0
    %1113 = vmatpush1.msra.mxu0 %v951
    %1114 = vmatprep.subr.mxu0 0.0
    %1115 = vmatpush1.msra.mxu0 %v952
    %1116 = vmatprep.subr.mxu0 0.0
    %1117 = vmatpush1.msra.mxu0 %v953
    %1118 = vmatprep.subr.mxu0 0.0
    %1119 = vmatpush1.msra.mxu0 %v954
    %1120 = vmatprep.subr.mxu0 0.0
    %1121 = vmatpush1.msra.mxu0 %v955
    %1122 = vmatprep.mubr.f32.mxu0 %v917
    %1123 = vmatmul.mubr.f32.gmra.mrb[0].mxu0 %v916
    %v1124 = vpop.f32.mrb[0].mxu0
    %v1125 = vadd.f32 %v1056, %v1124
    %v1126 = vpop.f32.mrb[0].mxu0
    %1127 = vdwg.mxu0
    %1128 = vmatprep.subr.mxu0 0.0
    %1129 = vmatpush1.msra.mxu0 %v956
    %1130 = vmatprep.subr.mxu0 0.0
    %1131 = vmatpush1.msra.mxu0 %v957
    %1132 = vmatprep.subr.mxu0 0.0
    %1133 = vmatpush1.msra.mxu0 %v958
    %1134 = vmatprep.subr.mxu0 0.0
    %1135 = vmatpush1.msra.mxu0 %v959
    %1136 = vmatprep.subr.mxu0 0.0
    %1137 = vmatpush1.msra.mxu0 %v960
    %1138 = vmatprep.subr.mxu0 0.0
    %1139 = vmatpush1.msra.mxu0 %v961
    %1140 = vmatprep.subr.mxu0 0.0
    %1141 = vmatpush1.msra.mxu0 %v962
    %1142 = vmatprep.subr.mxu0 0.0
    %1143 = vmatpush1.msra.mxu0 %v963
    %1144 = vmatprep.subr.mxu0 0.0
    %1145 = vmatpush1.msra.mxu0 %v964
    %1146 = vmatprep.subr.mxu0 0.0
    %1147 = vmatpush1.msra.mxu0 %v965
    %1148 = vmatprep.subr.mxu0 0.0
    %1149 = vmatpush1.msra.mxu0 %v966
    %1150 = vmatprep.subr.mxu0 0.0
    %1151 = vmatpush1.msra.mxu0 %v967
    %1152 = vmatprep.subr.mxu0 0.0
    %1153 = vmatpush1.msra.mxu0 %v968
    %1154 = vmatprep.subr.mxu0 0.0
    %1155 = vmatpush1.msra.mxu0 %v969
    %1156 = vmatprep.subr.mxu0 0.0
    %1157 = vmatpush1.msra.mxu0 %v970
    %1158 = vmatprep.subr.mxu0 0.0
    %1159 = vmatpush1.msra.mxu0 %v971
    %1160 = vmatprep.subr.mxu0 0.0
    %1161 = vmatpush1.msra.mxu0 %v972
    %1162 = vmatprep.subr.mxu0 0.0
    %1163 = vmatpush1.msra.mxu0 %v973
    %1164 = vmatprep.subr.mxu0 0.0
    %1165 = vmatpush1.msra.mxu0 %v974
    %1166 = vmatprep.subr.mxu0 0.0
    %1167 = vmatpush1.msra.mxu0 %v975
    %1168 = vmatprep.subr.mxu0 0.0
    %1169 = vmatpush1.msra.mxu0 %v976
    %1170 = vmatprep.subr.mxu0 0.0
    %1171 = vmatpush1.msra.mxu0 %v977
    %1172 = vmatprep.subr.mxu0 0.0
    %1173 = vmatpush1.msra.mxu0 %v978
    %1174 = vmatprep.subr.mxu0 0.0
    %1175 = vmatpush1.msra.mxu0 %v979
    %1176 = vmatprep.subr.mxu0 0.0
    %1177 = vmatpush1.msra.mxu0 %v980
    %1178 = vmatprep.subr.mxu0 0.0
    %1179 = vmatpush1.msra.mxu0 %v981
    %1180 = vmatprep.subr.mxu0 0.0
    %1181 = vmatpush1.msra.mxu0 %v982
    %1182 = vmatprep.subr.mxu0 0.0
    %1183 = vmatpush1.msra.mxu0 %v983
    %1184 = vmatprep.subr.mxu0 0.0
    %1185 = vmatpush1.msra.mxu0 %v984
    %1186 = vmatprep.subr.mxu0 0.0
    %1187 = vmatpush1.msra.mxu0 %v985
    %1188 = vmatprep.subr.mxu0 0.0
    %1189 = vmatpush1.msra.mxu0 %v986
    %1190 = vmatprep.subr.mxu0 0.0
    %1191 = vmatpush1.msra.mxu0 %v987
    %1192 = vmatprep.mubr.f32.mxu0 %v919
    %1193 = vmatmul.mubr.f32.gmra.mrb[0].mxu0 %v918
    %v1194 = vpop.f32.mrb[0].mxu0
    %v1195 = vadd.f32 %v1125, %v1194
    %v1196 = vpop.f32.mrb[0].mxu0
    %1197 = vdwg.mxu0
    %1198 = vmatprep.subr.mxu0 0.0
    %1199 = vmatpush1.msra.mxu0 %v988
    %1200 = vmatprep.subr.mxu0 0.0
    %1201 = vmatpush1.msra.mxu0 %v989
    %1202 = vmatprep.subr.mxu0 0.0
    %1203 = vmatpush1.msra.mxu0 %v990
    %1204 = vmatprep.subr.mxu0 0.0
    %1205 = vmatpush1.msra.mxu0 %v991
    %1206 = vmatprep.subr.mxu0 0.0
    %1207 = vmatpush1.msra.mxu0 %v992
    %1208 = vmatprep.subr.mxu0 0.0
    %1209 = vmatpush1.msra.mxu0 %v993
    %1210 = vmatprep.subr.mxu0 0.0
    %1211 = vmatpush1.msra.mxu0 %v994
    %1212 = vmatprep.subr.mxu0 0.0
    %1213 = vmatpush1.msra.mxu0 %v995
    %1214 = vmatprep.subr.mxu0 0.0
    %1215 = vmatpush1.msra.mxu0 %v996
    %1216 = vmatprep.subr.mxu0 0.0
    %1217 = vmatpush1.msra.mxu0 %v997
    %1218 = vmatprep.subr.mxu0 0.0
    %1219 = vmatpush1.msra.mxu0 %v998
    %1220 = vmatprep.subr.mxu0 0.0
    %1221 = vmatpush1.msra.mxu0 %v999
    %1222 = vmatprep.subr.mxu0 0.0
    %1223 = vmatpush1.msra.mxu0 %v1000
    %1224 = vmatprep.subr.mxu0 0.0
    %1225 = vmatpush1.msra.mxu0 %v1001
    %1226 = vmatprep.subr.mxu0 0.0
    %1227 = vmatpush1.msra.mxu0 %v1002
    %1228 = vmatprep.subr.mxu0 0.0
    %1229 = vmatpush1.msra.mxu0 %v1003
    %1230 = vmatprep.subr.mxu0 0.0
    %1231 = vmatpush1.msra.mxu0 %v1004
    %1232 = vmatprep.subr.mxu0 0.0
    %1233 = vmatpush1.msra.mxu0 %v1005
    %1234 = vmatprep.subr.mxu0 0.0
    %1235 = vmatpush1.msra.mxu0 %v1006
    %1236 = vmatprep.subr.mxu0 0.0
    %1237 = vmatpush1.msra.mxu0 %v1007
    %1238 = vmatprep.subr.mxu0 0.0
    %1239 = vmatpush1.msra.mxu0 %v1008
    %1240 = vmatprep.subr.mxu0 0.0
    %1241 = vmatpush1.msra.mxu0 %v1009
    %1242 = vmatprep.subr.mxu0 0.0
    %1243 = vmatpush1.msra.mxu0 %v1010
    %1244 = vmatprep.subr.mxu0 0.0
    %1245 = vmatpush1.msra.mxu0 %v1011
    %1246 = vmatprep.subr.mxu0 0.0
    %1247 = vmatpush1.msra.mxu0 %v1012
    %1248 = vmatprep.subr.mxu0 0.0
    %1249 = vmatpush1.msra.mxu0 %v1013
    %1250 = vmatprep.subr.mxu0 0.0
    %1251 = vmatpush1.msra.mxu0 %v1014
    %1252 = vmatprep.subr.mxu0 0.0
    %1253 = vmatpush1.msra.mxu0 %v1015
    %1254 = vmatprep.subr.mxu0 0.0
    %1255 = vmatpush1.msra.mxu0 %v1016
    %1256 = vmatprep.subr.mxu0 0.0
    %1257 = vmatpush1.msra.mxu0 %v1017
    %1258 = vmatprep.subr.mxu0 0.0
    %1259 = vmatpush1.msra.mxu0 %v1018
    %1260 = vmatprep.subr.mxu0 0.0
    %1261 = vmatpush1.msra.mxu0 %v1019
    %1262 = vmatprep.mubr.f32.mxu0 %v921
    %1263 = vmatmul.mubr.f32.gmra.mrb[0].mxu0 %v920
    %v1264 = vpop.f32.mrb[0].mxu0
    %v1265 = vadd.f32 %v1195, %v1264
    %v1266 = vpop.f32.mrb[0].mxu0
    %1267 = vdwg.mxu0
    %1268 = vmatprep.subr.mxu0 0.0
    %1269 = vmatpush1.msra.mxu0 %v1020
    %1270 = vmatprep.subr.mxu0 0.0
    %1271 = vmatpush1.msra.mxu0 %v1021
    %1272 = vmatprep.subr.mxu0 0.0
    %1273 = vmatpush1.msra.mxu0 %v1022
    %1274 = vmatprep.subr.mxu0 0.0
    %1275 = vmatpush1.msra.mxu0 %v1023
    %1276 = vmatprep.subr.mxu0 0.0
    %1277 = vmatpush1.msra.mxu0 %v1024
    %1278 = vmatprep.subr.mxu0 0.0
    %1279 = vmatpush1.msra.mxu0 %v1025
    %1280 = vmatprep.subr.mxu0 0.0
    %1281 = vmatpush1.msra.mxu0 %v1026
    %1282 = vmatprep.subr.mxu0 0.0
    %1283 = vmatpush1.msra.mxu0 %v1027
    %1284 = vmatprep.subr.mxu0 0.0
    %1285 = vmatpush1.msra.mxu0 %v1028
    %1286 = vmatprep.subr.mxu0 0.0
    %1287 = vmatpush1.msra.mxu0 %v1029
    %1288 = vmatprep.subr.mxu0 0.0
    %1289 = vmatpush1.msra.mxu0 %v1030
    %1290 = vmatprep.subr.mxu0 0.0
    %1291 = vmatpush1.msra.mxu0 %v1031
    %1292 = vmatprep.subr.mxu0 0.0
    %1293 = vmatpush1.msra.mxu0 %v1032
    %1294 = vmatprep.subr.mxu0 0.0
    %1295 = vmatpush1.msra.mxu0 %v1033
    %1296 = vmatprep.subr.mxu0 0.0
    %1297 = vmatpush1.msra.mxu0 %v1034
    %1298 = vmatprep.subr.mxu0 0.0
    %1299 = vmatpush1.msra.mxu0 %v1035
    %1300 = vmatprep.subr.mxu0 0.0
    %1301 = vmatpush1.msra.mxu0 %v1036
    %1302 = vmatprep.subr.mxu0 0.0
    %1303 = vmatpush1.msra.mxu0 %v1037
    %1304 = vmatprep.subr.mxu0 0.0
    %1305 = vmatpush1.msra.mxu0 %v1038
    %1306 = vmatprep.subr.mxu0 0.0
    %1307 = vmatpush1.msra.mxu0 %v1039
    %1308 = vmatprep.subr.mxu0 0.0
    %1309 = vmatpush1.msra.mxu0 %v1040
    %1310 = vmatprep.subr.mxu0 0.0
    %1311 = vmatpush1.msra.mxu0 %v1041
    %1312 = vmatprep.subr.mxu0 0.0
    %1313 = vmatpush1.msra.mxu0 %v1042
    %1314 = vmatprep.subr.mxu0 0.0
    %1315 = vmatpush1.msra.mxu0 %v1043
    %1316 = vmatprep.subr.mxu0 0.0
    %1317 = vmatpush1.msra.mxu0 %v1044
    %1318 = vmatprep.subr.mxu0 0.0
    %1319 = vmatpush1.msra.mxu0 %v1045
    %1320 = vmatprep.subr.mxu0 0.0
    %1321 = vmatpush1.msra.mxu0 %v1046
    %1322 = vmatprep.subr.mxu0 0.0
    %1323 = vmatpush1.msra.mxu0 %v1047
    %1324 = vmatprep.subr.mxu0 0.0
    %1325 = vmatpush1.msra.mxu0 %v1048
    %1326 = vmatprep.subr.mxu0 0.0
    %1327 = vmatpush1.msra.mxu0 %v1049
    %1328 = vmatprep.subr.mxu0 0.0
    %1329 = vmatpush1.msra.mxu0 %v1050
    %1330 = vmatprep.subr.mxu0 0.0
    %1331 = vmatpush1.msra.mxu0 %v1051
    %1332 = vmatprep.mubr.f32.mxu0 %v923
    %1333 = vmatmul.mubr.f32.gmra.mrb[0].mxu0 %v922
    %v1334 = vpop.f32.mrb[0].mxu0
    %v1335 = vadd.f32 %v1265, %v1334
    %v1336 = vpop.f32.mrb[0].mxu0
    %1337 = vdwg.mxu0
    %v1338 = vlaneseq
    %v1339 = vand.u32 %v1338, 127
    %vm1340 = vcmp.eq.s32.totalorder %v1339, 24
    %v1341 = vsel %vm1340, %v1335, -inf
    %1342 = vmax.xlane.f32.xlu0 %v1341
    %v1343 = vpop.xlane.xlu0 %1342
    %vm1344 = vcmp.ge.s32.totalorder %v1339, 0
    %vm1345 = vcmp.lt.s32.totalorder %v1339, 8
    %vm1346 = vmand %vm1344, %vm1345
    %v1347 = vsel %vm1346, %v1335, -inf
    %1348 = vmax.xlane.f32.xlu0 %v1347
    %v1349 = vpop.xlane.xlu0 %1348
    %v1350 = vsel %vm1346, %v1349, 0.0
    %vm1351 = vcmp.ge.s32.totalorder %v1339, 8
    %vm1352 = vcmp.lt.s32.totalorder %v1339, 16
    %vm1353 = vmand %vm1351, %vm1352
    %v1354 = vsel %vm1353, %v1335, -inf
    %1355 = vmax.xlane.f32.xlu0 %v1354
    %v1356 = vpop.xlane.xlu0 %1355
    %v1357 = vsel %vm1353, %v1356, %v1350
    %vm1358 = vcmp.ge.s32.totalorder %v1339, 16
    %vm1359 = vcmp.lt.s32.totalorder %v1339, 24
    %vm1360 = vmand %vm1358, %vm1359
    %v1361 = vsel %vm1360, %v1335, -inf
    %1362 = vmax.xlane.f32.xlu0 %v1361
    %v1363 = vpop.xlane.xlu0 %1362
    %v1364 = vsel %vm1360, %v1363, %v1357
    %v1365 = vsub.f32 %v1335, %v1364
    %v1366 = vadd.f32 %v1365, %v1343
    %1367 = vst [vmem:[#allocation11] sm:$0xff] %v1366
    // Predicated region
    $region46: #{tpu_custom_call.1} parent=1 // pred_check
      _
    $region47: #{tpu_custom_call.1} parent=1 // pred_check_branch
      %1369 = sbr.rel (0) target = $region49
    $region48: #{tpu_custom_call.1} parent=1 // pred_region
      %s1371 = ssub.s32 128, 128
      %1372 = vsyncadd [#allocation4], %s1371
      %s1374 = sshll.u32 [#allocation11], 4
      %s1375 = int_to_ptr.vmem [resolvable:$true] %s1374
      %1377 = dma.vmem_to_hbm [thread:$0]  %s1375, 128, %s6, [#allocation4]
    $region49: #{tpu_custom_call.1} parent=1 // pred_fallthru
      _
    // Predicated region
    $region50: #{tpu_custom_call.1} parent=1 // pred_check
      _
    $region51: #{tpu_custom_call.1} parent=1 // pred_check_branch
      %1379 = sbr.rel (0) target = $region53
    $region52: #{tpu_custom_call.1} parent=1 // pred_region
      %1380 = dma.done [#allocation4], 128
    $region53: #{tpu_custom_call.1} parent=1 // pred_fallthru
      _
    %1381 = vsyncpa [#allocation3], 1
    %1382 = vsyncpa [#allocation6], 1
    %1383 = vsyncpa [#allocation9], 1
    %1384 = vsyncpa [#allocation4], 1

</llo_original>
